<compile_context>
chip_gen: v6e
topology: v6e:2x2x1
jax: 0.10.0
libtpu: 0.0.40
codegen_flags: <defaults>
</compile_context>

<pallas_src>
import functools
from dataclasses import dataclass, field
from typing import Any, Dict, List

import jax
import jax.numpy as jnp
from jax.experimental import pallas as pl
from jax.experimental.pallas import tpu as pltpu


# ----------------------------- Pallas kernel ------------------------------

def _pick_t_blk(T: int, max_blk: int = 8) -> int:
    """Largest divisor of T that is <= max_blk (time-chunk size)."""
    for cand in range(min(T, max_blk), 0, -1):
        if T % cand == 0:
            return cand
    return 1


@functools.lru_cache(maxsize=None)
def _build_forward(T, t_blk, B, d_in, hidden, d_out, output_history):
    """Builds a jitted pallas_call over the whole rollout, grid=(T//t_blk,)."""
    n_chunks = T // t_blk

    def kernel(x_ref, h0_ref, w_ih_ref, w_hh_ref, b_h_ref, w_out_ref,
               b_out_ref, *rest):
        if output_history:
            y_ref, hist_ref, mem_ref, h_scr, hs_scr = rest
        else:
            y_ref, mem_ref, h_scr, hs_scr = rest
            hist_ref = None

        c = pl.program_id(0)

        # Seed the carried hidden state from the provided initial memory.
        @pl.when(c == 0)
        def _():
            h_scr[...] = h0_ref[...].astype(h_scr.dtype)

        h = h_scr[...]                                   # f32 [B, H]

        # Unrolled inner loop over the T_BLK timesteps of this chunk.
        # Only the recurrence (h -> h') runs per-step; y is deferred.
        for t in range(t_blk):
            if output_history:
                # history_memories[t] = memory BEFORE applying the cell
                hist_ref[t] = h.astype(hist_ref.dtype)
            pre = (jnp.dot(x_ref[t], w_ih_ref[...],
                           preferred_element_type=jnp.float32)
                   + jnp.dot(h.astype(w_hh_ref.dtype), w_hh_ref[...],
                             preferred_element_type=jnp.float32)
                   + b_h_ref[...])                       # f32 accumulate + bias
            h = jnp.tanh(pre)                            # f32 epilogue (v5e-safe)
            hs_scr[t] = h                                # stash for deferred proj

        h_scr[...] = h                                   # carry to next chunk

        @pl.when(c == pl.num_programs(0) - 1)
        def _():
            mem_ref[...] = h.astype(mem_ref.dtype)       # final memory, once

        # Deferred output projection: ONE batched MXU matmul per chunk,
        # M = T_BLK*B instead of B.
        hs = hs_scr[...].reshape(t_blk * B, hidden).astype(w_out_ref.dtype)
        y = (jnp.dot(hs, w_out_ref[...], preferred_element_type=jnp.float32)
             + b_out_ref[...])
        y_ref[...] = y.reshape(t_blk, B, d_out).astype(y_ref.dtype)

    in_specs = [
        # per-chunk rollout block, streamed along the (sequential) grid axis
        pl.BlockSpec((t_blk, B, d_in), lambda c: (c, 0, 0)),
        # initial memory + weights/biases: constant index_map -> DMA'd once,
        # VMEM-resident across all chunks
        pl.BlockSpec((B, hidden), lambda c: (0, 0)),
        pl.BlockSpec((d_in, hidden), lambda c: (0, 0)),
        pl.BlockSpec((hidden, hidden), lambda c: (0, 0)),
        pl.BlockSpec((1, hidden), lambda c: (0, 0)),
        pl.BlockSpec((hidden, d_out), lambda c: (0, 0)),
        pl.BlockSpec((1, d_out), lambda c: (0, 0)),
    ]

    out_specs = [pl.BlockSpec((t_blk, B, d_out), lambda c: (c, 0, 0))]
    out_shapes = [jax.ShapeDtypeStruct((T, B, d_out), jnp.float32)]
    if output_history:
        out_specs.append(pl.BlockSpec((t_blk, B, hidden), lambda c: (c, 0, 0)))
        out_shapes.append(jax.ShapeDtypeStruct((T, B, hidden), jnp.float32))
    out_specs.append(pl.BlockSpec((B, hidden), lambda c: (0, 0)))
    out_shapes.append(jax.ShapeDtypeStruct((B, hidden), jnp.float32))

    grid_spec = pltpu.PrefetchScalarGridSpec(
        num_scalar_prefetch=0,
        grid=(n_chunks,),
        in_specs=in_specs,
        out_specs=tuple(out_specs),
        scratch_shapes=[
            pltpu.VMEM((B, hidden), jnp.float32),          # carried hidden state
            pltpu.VMEM((t_blk, B, hidden), jnp.float32),   # h' per step (for y)
        ],
    )

    fn = pl.pallas_call(
        kernel,
        out_shape=tuple(out_shapes),
        grid_spec=grid_spec,
        compiler_params=pltpu.CompilerParams(
            # the recurrence is sequential in time
            dimension_semantics=("arbitrary",)),
    )
    return jax.jit(fn)


# -------------------- RecurrentTrainingModel equivalent --------------------

@dataclass
class RecurrentTrainingModelOutput:
    outputs: List[Any] = None
    memory: Any = None
    history_memories: List[Any] = field(default_factory=list)
    rng_states: Dict = field(default_factory=dict)


class RecurrentTrainingModel:
    """JAX/Pallas port: wraps a concrete tanh-RNN recurrent_training_cell."""

    def __init__(self, d_in: int, hidden: int, d_out: int, key,
                 t_blk_max: int = 8):
        k1, k2, k3 = jax.random.split(key, 3)
        self.w_ih = (jax.random.normal(k1, (d_in, hidden), jnp.float32)
                     / jnp.sqrt(d_in))
        self.w_hh = (jax.random.normal(k2, (hidden, hidden), jnp.float32)
                     / jnp.sqrt(hidden))
        self.w_out = (jax.random.normal(k3, (hidden, d_out), jnp.float32)
                      / jnp.sqrt(hidden))
        self.b_h = jnp.zeros((1, hidden), jnp.float32)
        self.b_out = jnp.zeros((1, d_out), jnp.float32)
        # bf16 copies feed the MXU (f32 accumulation inside the kernel).
        self.w_ih_bf16 = self.w_ih.astype(jnp.bfloat16)
        self.w_hh_bf16 = self.w_hh.astype(jnp.bfloat16)
        self.w_out_bf16 = self.w_out.astype(jnp.bfloat16)
        self.d_in = d_in
        self.hidden = hidden
        self.d_out = d_out
        self.t_blk_max = t_blk_max

    def construct_memory(self, batch_size: int):
        return jnp.zeros((batch_size, self.hidden), jnp.float32)

    def forward(self, rollout: List[jnp.ndarray], memory,
                output_history_memories: bool = False,
                output_rng_states: bool = False):
        T = len(rollout)
        B, d_in = rollout[0].shape
        x_stack = jnp.stack(rollout, axis=0).astype(jnp.bfloat16)
        t_blk = _pick_t_blk(T, self.t_blk_max)

        fwd = _build_forward(T, t_blk, B, d_in, self.hidden, self.d_out,
                             bool(output_history_memories))
        res = fwd(x_stack, memory, self.w_ih_bf16, self.w_hh_bf16, self.b_h,
                  self.w_out_bf16, self.b_out)

        if output_history_memories:
            ys, hists, final_mem = res
            history_memories = list(hists)               # T x [B, H]
        else:
            ys, final_mem = res
            history_memories = []

        outputs = list(ys)                               # T x [B, D_out]
        # TODO(synk): PyTorch snapshots torch/CUDA RNG state per step; JAX has
        # no global RNG state to capture, so rng_states stays empty.
        rng_states = {"fwd_cpu_state": [], "fwd_gpu_states": []}
        return RecurrentTrainingModelOutput(
            outputs=outputs,
            memory=final_mem,
            history_memories=history_memories,
            rng_states=rng_states,
        )


# --------------------------------- main ------------------------------------

if __name__ == "__main__":
    # Lane-dense (128-wide) feature dims; B=8 fills the sublane axis.
    # T=16 with T_BLK=8 exercises the chunked recurrence (grid=(2,)).
    B, D_IN, HIDDEN, D_OUT, T = 8, 128, 128, 128, 16

    key = jax.random.PRNGKey(0)
    k_model, k_data = jax.random.split(key)

    model = RecurrentTrainingModel(D_IN, HIDDEN, D_OUT, k_model)

    # rollout: list of T inputs, each [B, D_IN]  (layout: batch, feature)
    data_keys = jax.random.split(k_data, T)
    rollout = [jax.random.normal(k, (B, D_IN), jnp.float32) for k in data_keys]

    memory0 = model.construct_memory(B)

    result = model.forward(rollout, memory0,
                           output_history_memories=True,
                           output_rng_states=True)

    # Block on everything.
    jax.block_until_ready(result.memory)
    for o in result.outputs:
        jax.block_until_ready(o)

    # Sanity checks vs. a pure-JAX reference of the SAME cell
    # (bf16 MXU inputs, f32 accumulation, f32 tanh epilogue).
    h_ref = memory0
    for t in range(T):
        assert jnp.allclose(result.history_memories[t], h_ref,
                            atol=1e-3, rtol=1e-3), f"history mismatch at t={t}"
        pre = (jnp.dot(rollout[t].astype(jnp.bfloat16), model.w_ih_bf16,
                       preferred_element_type=jnp.float32)
               + jnp.dot(h_ref.astype(jnp.bfloat16), model.w_hh_bf16,
                         preferred_element_type=jnp.float32)
               + model.b_h)
        h_ref = jnp.tanh(pre)
        y_ref = (jnp.dot(h_ref.astype(jnp.bfloat16), model.w_out_bf16,
                         preferred_element_type=jnp.float32) + model.b_out)
        assert jnp.allclose(result.outputs[t], y_ref,
                            atol=1e-3, rtol=1e-3), f"output mismatch at t={t}"
    assert jnp.allclose(result.memory, h_ref, atol=1e-3, rtol=1e-3)
    assert len(result.outputs) == T
    assert len(result.history_memories) == T

    # Also exercise the no-history kernel variant (drops that HBM stream).
    result2 = model.forward(rollout, memory0)
    jax.block_until_ready(result2.memory)
    assert len(result2.history_memories) == 0
    assert jnp.allclose(result2.memory, result.memory, atol=1e-5, rtol=1e-5)
    assert jnp.allclose(result2.outputs[-1], result.outputs[-1],
                        atol=1e-5, rtol=1e-5)

    print("KERNEL_OK")
</pallas_src>

<mosaic_0001>
module attributes {stable_mosaic.version = 11 : i64} {
  func.func @kernel(%arg0: i32, %arg1: memref<8x8x128xbf16, #tpu.memory_space<vmem>>, %arg2: memref<8x128xf32, #tpu.memory_space<vmem>>, %arg3: memref<128x128xbf16, #tpu.memory_space<vmem>>, %arg4: memref<128x128xbf16, #tpu.memory_space<vmem>>, %arg5: memref<1x128xf32, #tpu.memory_space<vmem>>, %arg6: memref<128x128xbf16, #tpu.memory_space<vmem>>, %arg7: memref<1x128xf32, #tpu.memory_space<vmem>>, %arg8: memref<8x8x128xf32, #tpu.memory_space<vmem>>, %arg9: memref<8x8x128xf32, #tpu.memory_space<vmem>>, %arg10: memref<8x128xf32, #tpu.memory_space<vmem>>, %arg11: memref<8x128xf32, #tpu.memory_space<vmem>>, %arg12: memref<8x8x128xf32, #tpu.memory_space<vmem>>) attributes {dimension_semantics = [#tpu.dimension_semantics<arbitrary>], iteration_bounds = array<i64: 2>, scalar_prefetch = 0 : i64, scratch_operands = 2 : i64, tpu.core_type = #tpu.core_type<tc>, window_params = [{transform_indices = @transform_0, window_bounds = array<i64: 8, 8, 128>}, {pipeline_mode = #tpu.pipeline_mode<synchronous>, transform_indices = @transform_1, window_bounds = array<i64: 8, 128>}, {pipeline_mode = #tpu.pipeline_mode<synchronous>, transform_indices = @transform_2, window_bounds = array<i64: 128, 128>}, {pipeline_mode = #tpu.pipeline_mode<synchronous>, transform_indices = @transform_3, window_bounds = array<i64: 128, 128>}, {pipeline_mode = #tpu.pipeline_mode<synchronous>, transform_indices = @transform_4, window_bounds = array<i64: 1, 128>}, {pipeline_mode = #tpu.pipeline_mode<synchronous>, transform_indices = @transform_5, window_bounds = array<i64: 128, 128>}, {pipeline_mode = #tpu.pipeline_mode<synchronous>, transform_indices = @transform_6, window_bounds = array<i64: 1, 128>}, {transform_indices = @transform_7, window_bounds = array<i64: 8, 8, 128>}, {transform_indices = @transform_8, window_bounds = array<i64: 8, 8, 128>}, {pipeline_mode = #tpu.pipeline_mode<synchronous>, transform_indices = @transform_9, window_bounds = array<i64: 8, 128>}]} {
    %c0_i32 = arith.constant 0 : i32
    %0 = arith.cmpi eq, %arg0, %c0_i32 : i32
    %1 = arith.extui %0 : i1 to i32
    %c0_i32_0 = arith.constant 0 : i32
    %2 = arith.cmpi ne, %1, %c0_i32_0 : i32
    scf.if %2 {
      %c0_144 = arith.constant 0 : index
      %c0_145 = arith.constant 0 : index
      %162 = vector.load %arg2[%c0_144, %c0_145] : memref<8x128xf32, #tpu.memory_space<vmem>>, vector<8x128xf32>
      %c0_146 = arith.constant 0 : index
      %c0_147 = arith.constant 0 : index
      %163 = vector.load %arg11[%c0_146, %c0_147] : memref<8x128xf32, #tpu.memory_space<vmem>>, vector<8x128xf32>
      tpu.vector_store %arg11[%c0_146, %c0_147], %162 {strides = array<i32>} : memref<8x128xf32, #tpu.memory_space<vmem>>, vector<8x128xf32>,
    } else {
    }
    %c0 = arith.constant 0 : index
    %c0_1 = arith.constant 0 : index
    %3 = vector.load %arg11[%c0, %c0_1] : memref<8x128xf32, #tpu.memory_space<vmem>>, vector<8x128xf32>
    %c0_2 = arith.constant 0 : index
    %c0_3 = arith.constant 0 : index
    %c0_4 = arith.constant 0 : index
    %4 = vector.load %arg9[%c0_2, %c0_3, %c0_4] : memref<8x8x128xf32, #tpu.memory_space<vmem>>, vector<1x8x128xf32>
    %5 = vector.shape_cast %4 : vector<1x8x128xf32> to vector<8x128xf32>
    %6 = vector.shape_cast %3 : vector<8x128xf32> to vector<1x8x128xf32>
    tpu.vector_store %arg9[%c0_2, %c0_3, %c0_4], %6 {strides = array<i32>} : memref<8x8x128xf32, #tpu.memory_space<vmem>>, vector<1x8x128xf32>,
    %c0_5 = arith.constant 0 : index
    %c0_6 = arith.constant 0 : index
    %c0_7 = arith.constant 0 : index
    %7 = vector.load %arg1[%c0_5, %c0_6, %c0_7] : memref<8x8x128xbf16, #tpu.memory_space<vmem>>, vector<1x8x128xbf16>
    %8 = vector.shape_cast %7 : vector<1x8x128xbf16> to vector<8x128xbf16>
    %c0_8 = arith.constant 0 : index
    %c0_9 = arith.constant 0 : index
    %9 = vector.load %arg3[%c0_8, %c0_9] : memref<128x128xbf16, #tpu.memory_space<vmem>>, vector<128x128xbf16>
    %cst = arith.constant dense<0.000000e+00> : vector<8x128xf32>
    %10 = tpu.matmul %8, %9, %cst {dimension_numbers = #tpu.dot_dimension_numbers<[1], [0], [0], [1], [0, 0, 1, 1], [], []>} : vector<8x128xbf16>, vector<128x128xbf16>, vector<8x128xf32> -> vector<8x128xf32>
    %11 = arith.truncf %3 : vector<8x128xf32> to vector<8x128xbf16>
    %c0_10 = arith.constant 0 : index
    %c0_11 = arith.constant 0 : index
    %12 = vector.load %arg4[%c0_10, %c0_11] : memref<128x128xbf16, #tpu.memory_space<vmem>>, vector<128x128xbf16>
    %cst_12 = arith.constant dense<0.000000e+00> : vector<8x128xf32>
    %13 = tpu.matmul %11, %12, %cst_12 {dimension_numbers = #tpu.dot_dimension_numbers<[1], [0], [0], [1], [0, 0, 1, 1], [], []>} : vector<8x128xbf16>, vector<128x128xbf16>, vector<8x128xf32> -> vector<8x128xf32>
    %14 = arith.addf %10, %13 : vector<8x128xf32>
    %c0_13 = arith.constant 0 : index
    %c0_14 = arith.constant 0 : index
    %15 = vector.load %arg5[%c0_13, %c0_14] : memref<1x128xf32, #tpu.memory_space<vmem>>, vector<1x128xf32>
    %16 = vector.broadcast %15 : vector<1x128xf32> to vector<8x128xf32>
    %17 = arith.addf %14, %16 : vector<8x128xf32>
    %18 = math.tanh %17 : vector<8x128xf32>
    %c0_15 = arith.constant 0 : index
    %c0_16 = arith.constant 0 : index
    %c0_17 = arith.constant 0 : index
    %19 = vector.load %arg12[%c0_15, %c0_16, %c0_17] : memref<8x8x128xf32, #tpu.memory_space<vmem>>, vector<1x8x128xf32>
    %20 = vector.shape_cast %19 : vector<1x8x128xf32> to vector<8x128xf32>
    %21 = vector.shape_cast %18 : vector<8x128xf32> to vector<1x8x128xf32>
    tpu.vector_store %arg12[%c0_15, %c0_16, %c0_17], %21 {strides = array<i32>} : memref<8x8x128xf32, #tpu.memory_space<vmem>>, vector<1x8x128xf32>,
    %c1 = arith.constant 1 : index
    %c0_18 = arith.constant 0 : index
    %c0_19 = arith.constant 0 : index
    %22 = vector.load %arg9[%c1, %c0_18, %c0_19] : memref<8x8x128xf32, #tpu.memory_space<vmem>>, vector<1x8x128xf32>
    %23 = vector.shape_cast %22 : vector<1x8x128xf32> to vector<8x128xf32>
    %24 = vector.shape_cast %18 : vector<8x128xf32> to vector<1x8x128xf32>
    tpu.vector_store %arg9[%c1, %c0_18, %c0_19], %24 {strides = array<i32>} : memref<8x8x128xf32, #tpu.memory_space<vmem>>, vector<1x8x128xf32>,
    %c1_20 = arith.constant 1 : index
    %c0_21 = arith.constant 0 : index
    %c0_22 = arith.constant 0 : index
    %25 = vector.load %arg1[%c1_20, %c0_21, %c0_22] : memref<8x8x128xbf16, #tpu.memory_space<vmem>>, vector<1x8x128xbf16>
    %26 = vector.shape_cast %25 : vector<1x8x128xbf16> to vector<8x128xbf16>
    %c0_23 = arith.constant 0 : index
    %c0_24 = arith.constant 0 : index
    %27 = vector.load %arg3[%c0_23, %c0_24] : memref<128x128xbf16, #tpu.memory_space<vmem>>, vector<128x128xbf16>
    %cst_25 = arith.constant dense<0.000000e+00> : vector<8x128xf32>
    %28 = tpu.matmul %26, %27, %cst_25 {dimension_numbers = #tpu.dot_dimension_numbers<[1], [0], [0], [1], [0, 0, 1, 1], [], []>} : vector<8x128xbf16>, vector<128x128xbf16>, vector<8x128xf32> -> vector<8x128xf32>
    %29 = arith.truncf %18 : vector<8x128xf32> to vector<8x128xbf16>
    %c0_26 = arith.constant 0 : index
    %c0_27 = arith.constant 0 : index
    %30 = vector.load %arg4[%c0_26, %c0_27] : memref<128x128xbf16, #tpu.memory_space<vmem>>, vector<128x128xbf16>
    %cst_28 = arith.constant dense<0.000000e+00> : vector<8x128xf32>
    %31 = tpu.matmul %29, %30, %cst_28 {dimension_numbers = #tpu.dot_dimension_numbers<[1], [0], [0], [1], [0, 0, 1, 1], [], []>} : vector<8x128xbf16>, vector<128x128xbf16>, vector<8x128xf32> -> vector<8x128xf32>
    %32 = arith.addf %28, %31 : vector<8x128xf32>
    %c0_29 = arith.constant 0 : index
    %c0_30 = arith.constant 0 : index
    %33 = vector.load %arg5[%c0_29, %c0_30] : memref<1x128xf32, #tpu.memory_space<vmem>>, vector<1x128xf32>
    %34 = vector.broadcast %33 : vector<1x128xf32> to vector<8x128xf32>
    %35 = arith.addf %32, %34 : vector<8x128xf32>
    %36 = math.tanh %35 : vector<8x128xf32>
    %c1_31 = arith.constant 1 : index
    %c0_32 = arith.constant 0 : index
    %c0_33 = arith.constant 0 : index
    %37 = vector.load %arg12[%c1_31, %c0_32, %c0_33] : memref<8x8x128xf32, #tpu.memory_space<vmem>>, vector<1x8x128xf32>
    %38 = vector.shape_cast %37 : vector<1x8x128xf32> to vector<8x128xf32>
    %39 = vector.shape_cast %36 : vector<8x128xf32> to vector<1x8x128xf32>
    tpu.vector_store %arg12[%c1_31, %c0_32, %c0_33], %39 {strides = array<i32>} : memref<8x8x128xf32, #tpu.memory_space<vmem>>, vector<1x8x128xf32>,
    %c2 = arith.constant 2 : index
    %c0_34 = arith.constant 0 : index
    %c0_35 = arith.constant 0 : index
    %40 = vector.load %arg9[%c2, %c0_34, %c0_35] : memref<8x8x128xf32, #tpu.memory_space<vmem>>, vector<1x8x128xf32>
    %41 = vector.shape_cast %40 : vector<1x8x128xf32> to vector<8x128xf32>
    %42 = vector.shape_cast %36 : vector<8x128xf32> to vector<1x8x128xf32>
    tpu.vector_store %arg9[%c2, %c0_34, %c0_35], %42 {strides = array<i32>} : memref<8x8x128xf32, #tpu.memory_space<vmem>>, vector<1x8x128xf32>,
    %c2_36 = arith.constant 2 : index
    %c0_37 = arith.constant 0 : index
    %c0_38 = arith.constant 0 : index
    %43 = vector.load %arg1[%c2_36, %c0_37, %c0_38] : memref<8x8x128xbf16, #tpu.memory_space<vmem>>, vector<1x8x128xbf16>
    %44 = vector.shape_cast %43 : vector<1x8x128xbf16> to vector<8x128xbf16>
    %c0_39 = arith.constant 0 : index
    %c0_40 = arith.constant 0 : index
    %45 = vector.load %arg3[%c0_39, %c0_40] : memref<128x128xbf16, #tpu.memory_space<vmem>>, vector<128x128xbf16>
    %cst_41 = arith.constant dense<0.000000e+00> : vector<8x128xf32>
    %46 = tpu.matmul %44, %45, %cst_41 {dimension_numbers = #tpu.dot_dimension_numbers<[1], [0], [0], [1], [0, 0, 1, 1], [], []>} : vector<8x128xbf16>, vector<128x128xbf16>, vector<8x128xf32> -> vector<8x128xf32>
    %47 = arith.truncf %36 : vector<8x128xf32> to vector<8x128xbf16>
    %c0_42 = arith.constant 0 : index
    %c0_43 = arith.constant 0 : index
    %48 = vector.load %arg4[%c0_42, %c0_43] : memref<128x128xbf16, #tpu.memory_space<vmem>>, vector<128x128xbf16>
    %cst_44 = arith.constant dense<0.000000e+00> : vector<8x128xf32>
    %49 = tpu.matmul %47, %48, %cst_44 {dimension_numbers = #tpu.dot_dimension_numbers<[1], [0], [0], [1], [0, 0, 1, 1], [], []>} : vector<8x128xbf16>, vector<128x128xbf16>, vector<8x128xf32> -> vector<8x128xf32>
    %50 = arith.addf %46, %49 : vector<8x128xf32>
    %c0_45 = arith.constant 0 : index
    %c0_46 = arith.constant 0 : index
    %51 = vector.load %arg5[%c0_45, %c0_46] : memref<1x128xf32, #tpu.memory_space<vmem>>, vector<1x128xf32>
    %52 = vector.broadcast %51 : vector<1x128xf32> to vector<8x128xf32>
    %53 = arith.addf %50, %52 : vector<8x128xf32>
    %54 = math.tanh %53 : vector<8x128xf32>
    %c2_47 = arith.constant 2 : index
    %c0_48 = arith.constant 0 : index
    %c0_49 = arith.constant 0 : index
    %55 = vector.load %arg12[%c2_47, %c0_48, %c0_49] : memref<8x8x128xf32, #tpu.memory_space<vmem>>, vector<1x8x128xf32>
    %56 = vector.shape_cast %55 : vector<1x8x128xf32> to vector<8x128xf32>
    %57 = vector.shape_cast %54 : vector<8x128xf32> to vector<1x8x128xf32>
    tpu.vector_store %arg12[%c2_47, %c0_48, %c0_49], %57 {strides = array<i32>} : memref<8x8x128xf32, #tpu.memory_space<vmem>>, vector<1x8x128xf32>,
    %c3 = arith.constant 3 : index
    %c0_50 = arith.constant 0 : index
    %c0_51 = arith.constant 0 : index
    %58 = vector.load %arg9[%c3, %c0_50, %c0_51] : memref<8x8x128xf32, #tpu.memory_space<vmem>>, vector<1x8x128xf32>
    %59 = vector.shape_cast %58 : vector<1x8x128xf32> to vector<8x128xf32>
    %60 = vector.shape_cast %54 : vector<8x128xf32> to vector<1x8x128xf32>
    tpu.vector_store %arg9[%c3, %c0_50, %c0_51], %60 {strides = array<i32>} : memref<8x8x128xf32, #tpu.memory_space<vmem>>, vector<1x8x128xf32>,
    %c3_52 = arith.constant 3 : index
    %c0_53 = arith.constant 0 : index
    %c0_54 = arith.constant 0 : index
    %61 = vector.load %arg1[%c3_52, %c0_53, %c0_54] : memref<8x8x128xbf16, #tpu.memory_space<vmem>>, vector<1x8x128xbf16>
    %62 = vector.shape_cast %61 : vector<1x8x128xbf16> to vector<8x128xbf16>
    %c0_55 = arith.constant 0 : index
    %c0_56 = arith.constant 0 : index
    %63 = vector.load %arg3[%c0_55, %c0_56] : memref<128x128xbf16, #tpu.memory_space<vmem>>, vector<128x128xbf16>
    %cst_57 = arith.constant dense<0.000000e+00> : vector<8x128xf32>
    %64 = tpu.matmul %62, %63, %cst_57 {dimension_numbers = #tpu.dot_dimension_numbers<[1], [0], [0], [1], [0, 0, 1, 1], [], []>} : vector<8x128xbf16>, vector<128x128xbf16>, vector<8x128xf32> -> vector<8x128xf32>
    %65 = arith.truncf %54 : vector<8x128xf32> to vector<8x128xbf16>
    %c0_58 = arith.constant 0 : index
    %c0_59 = arith.constant 0 : index
    %66 = vector.load %arg4[%c0_58, %c0_59] : memref<128x128xbf16, #tpu.memory_space<vmem>>, vector<128x128xbf16>
    %cst_60 = arith.constant dense<0.000000e+00> : vector<8x128xf32>
    %67 = tpu.matmul %65, %66, %cst_60 {dimension_numbers = #tpu.dot_dimension_numbers<[1], [0], [0], [1], [0, 0, 1, 1], [], []>} : vector<8x128xbf16>, vector<128x128xbf16>, vector<8x128xf32> -> vector<8x128xf32>
    %68 = arith.addf %64, %67 : vector<8x128xf32>
    %c0_61 = arith.constant 0 : index
    %c0_62 = arith.constant 0 : index
    %69 = vector.load %arg5[%c0_61, %c0_62] : memref<1x128xf32, #tpu.memory_space<vmem>>, vector<1x128xf32>
    %70 = vector.broadcast %69 : vector<1x128xf32> to vector<8x128xf32>
    %71 = arith.addf %68, %70 : vector<8x128xf32>
    %72 = math.tanh %71 : vector<8x128xf32>
    %c3_63 = arith.constant 3 : index
    %c0_64 = arith.constant 0 : index
    %c0_65 = arith.constant 0 : index
    %73 = vector.load %arg12[%c3_63, %c0_64, %c0_65] : memref<8x8x128xf32, #tpu.memory_space<vmem>>, vector<1x8x128xf32>
    %74 = vector.shape_cast %73 : vector<1x8x128xf32> to vector<8x128xf32>
    %75 = vector.shape_cast %72 : vector<8x128xf32> to vector<1x8x128xf32>
    tpu.vector_store %arg12[%c3_63, %c0_64, %c0_65], %75 {strides = array<i32>} : memref<8x8x128xf32, #tpu.memory_space<vmem>>, vector<1x8x128xf32>,
    %c4 = arith.constant 4 : index
    %c0_66 = arith.constant 0 : index
    %c0_67 = arith.constant 0 : index
    %76 = vector.load %arg9[%c4, %c0_66, %c0_67] : memref<8x8x128xf32, #tpu.memory_space<vmem>>, vector<1x8x128xf32>
    %77 = vector.shape_cast %76 : vector<1x8x128xf32> to vector<8x128xf32>
    %78 = vector.shape_cast %72 : vector<8x128xf32> to vector<1x8x128xf32>
    tpu.vector_store %arg9[%c4, %c0_66, %c0_67], %78 {strides = array<i32>} : memref<8x8x128xf32, #tpu.memory_space<vmem>>, vector<1x8x128xf32>,
    %c4_68 = arith.constant 4 : index
    %c0_69 = arith.constant 0 : index
    %c0_70 = arith.constant 0 : index
    %79 = vector.load %arg1[%c4_68, %c0_69, %c0_70] : memref<8x8x128xbf16, #tpu.memory_space<vmem>>, vector<1x8x128xbf16>
    %80 = vector.shape_cast %79 : vector<1x8x128xbf16> to vector<8x128xbf16>
    %c0_71 = arith.constant 0 : index
    %c0_72 = arith.constant 0 : index
    %81 = vector.load %arg3[%c0_71, %c0_72] : memref<128x128xbf16, #tpu.memory_space<vmem>>, vector<128x128xbf16>
    %cst_73 = arith.constant dense<0.000000e+00> : vector<8x128xf32>
    %82 = tpu.matmul %80, %81, %cst_73 {dimension_numbers = #tpu.dot_dimension_numbers<[1], [0], [0], [1], [0, 0, 1, 1], [], []>} : vector<8x128xbf16>, vector<128x128xbf16>, vector<8x128xf32> -> vector<8x128xf32>
    %83 = arith.truncf %72 : vector<8x128xf32> to vector<8x128xbf16>
    %c0_74 = arith.constant 0 : index
    %c0_75 = arith.constant 0 : index
    %84 = vector.load %arg4[%c0_74, %c0_75] : memref<128x128xbf16, #tpu.memory_space<vmem>>, vector<128x128xbf16>
    %cst_76 = arith.constant dense<0.000000e+00> : vector<8x128xf32>
    %85 = tpu.matmul %83, %84, %cst_76 {dimension_numbers = #tpu.dot_dimension_numbers<[1], [0], [0], [1], [0, 0, 1, 1], [], []>} : vector<8x128xbf16>, vector<128x128xbf16>, vector<8x128xf32> -> vector<8x128xf32>
    %86 = arith.addf %82, %85 : vector<8x128xf32>
    %c0_77 = arith.constant 0 : index
    %c0_78 = arith.constant 0 : index
    %87 = vector.load %arg5[%c0_77, %c0_78] : memref<1x128xf32, #tpu.memory_space<vmem>>, vector<1x128xf32>
    %88 = vector.broadcast %87 : vector<1x128xf32> to vector<8x128xf32>
    %89 = arith.addf %86, %88 : vector<8x128xf32>
    %90 = math.tanh %89 : vector<8x128xf32>
    %c4_79 = arith.constant 4 : index
    %c0_80 = arith.constant 0 : index
    %c0_81 = arith.constant 0 : index
    %91 = vector.load %arg12[%c4_79, %c0_80, %c0_81] : memref<8x8x128xf32, #tpu.memory_space<vmem>>, vector<1x8x128xf32>
    %92 = vector.shape_cast %91 : vector<1x8x128xf32> to vector<8x128xf32>
    %93 = vector.shape_cast %90 : vector<8x128xf32> to vector<1x8x128xf32>
    tpu.vector_store %arg12[%c4_79, %c0_80, %c0_81], %93 {strides = array<i32>} : memref<8x8x128xf32, #tpu.memory_space<vmem>>, vector<1x8x128xf32>,
    %c5 = arith.constant 5 : index
    %c0_82 = arith.constant 0 : index
    %c0_83 = arith.constant 0 : index
    %94 = vector.load %arg9[%c5, %c0_82, %c0_83] : memref<8x8x128xf32, #tpu.memory_space<vmem>>, vector<1x8x128xf32>
    %95 = vector.shape_cast %94 : vector<1x8x128xf32> to vector<8x128xf32>
    %96 = vector.shape_cast %90 : vector<8x128xf32> to vector<1x8x128xf32>
    tpu.vector_store %arg9[%c5, %c0_82, %c0_83], %96 {strides = array<i32>} : memref<8x8x128xf32, #tpu.memory_space<vmem>>, vector<1x8x128xf32>,
    %c5_84 = arith.constant 5 : index
    %c0_85 = arith.constant 0 : index
    %c0_86 = arith.constant 0 : index
    %97 = vector.load %arg1[%c5_84, %c0_85, %c0_86] : memref<8x8x128xbf16, #tpu.memory_space<vmem>>, vector<1x8x128xbf16>
    %98 = vector.shape_cast %97 : vector<1x8x128xbf16> to vector<8x128xbf16>
    %c0_87 = arith.constant 0 : index
    %c0_88 = arith.constant 0 : index
    %99 = vector.load %arg3[%c0_87, %c0_88] : memref<128x128xbf16, #tpu.memory_space<vmem>>, vector<128x128xbf16>
    %cst_89 = arith.constant dense<0.000000e+00> : vector<8x128xf32>
    %100 = tpu.matmul %98, %99, %cst_89 {dimension_numbers = #tpu.dot_dimension_numbers<[1], [0], [0], [1], [0, 0, 1, 1], [], []>} : vector<8x128xbf16>, vector<128x128xbf16>, vector<8x128xf32> -> vector<8x128xf32>
    %101 = arith.truncf %90 : vector<8x128xf32> to vector<8x128xbf16>
    %c0_90 = arith.constant 0 : index
    %c0_91 = arith.constant 0 : index
    %102 = vector.load %arg4[%c0_90, %c0_91] : memref<128x128xbf16, #tpu.memory_space<vmem>>, vector<128x128xbf16>
    %cst_92 = arith.constant dense<0.000000e+00> : vector<8x128xf32>
    %103 = tpu.matmul %101, %102, %cst_92 {dimension_numbers = #tpu.dot_dimension_numbers<[1], [0], [0], [1], [0, 0, 1, 1], [], []>} : vector<8x128xbf16>, vector<128x128xbf16>, vector<8x128xf32> -> vector<8x128xf32>
    %104 = arith.addf %100, %103 : vector<8x128xf32>
    %c0_93 = arith.constant 0 : index
    %c0_94 = arith.constant 0 : index
    %105 = vector.load %arg5[%c0_93, %c0_94] : memref<1x128xf32, #tpu.memory_space<vmem>>, vector<1x128xf32>
    %106 = vector.broadcast %105 : vector<1x128xf32> to vector<8x128xf32>
    %107 = arith.addf %104, %106 : vector<8x128xf32>
    %108 = math.tanh %107 : vector<8x128xf32>
    %c5_95 = arith.constant 5 : index
    %c0_96 = arith.constant 0 : index
    %c0_97 = arith.constant 0 : index
    %109 = vector.load %arg12[%c5_95, %c0_96, %c0_97] : memref<8x8x128xf32, #tpu.memory_space<vmem>>, vector<1x8x128xf32>
    %110 = vector.shape_cast %109 : vector<1x8x128xf32> to vector<8x128xf32>
    %111 = vector.shape_cast %108 : vector<8x128xf32> to vector<1x8x128xf32>
    tpu.vector_store %arg12[%c5_95, %c0_96, %c0_97], %111 {strides = array<i32>} : memref<8x8x128xf32, #tpu.memory_space<vmem>>, vector<1x8x128xf32>,
    %c6 = arith.constant 6 : index
    %c0_98 = arith.constant 0 : index
    %c0_99 = arith.constant 0 : index
    %112 = vector.load %arg9[%c6, %c0_98, %c0_99] : memref<8x8x128xf32, #tpu.memory_space<vmem>>, vector<1x8x128xf32>
    %113 = vector.shape_cast %112 : vector<1x8x128xf32> to vector<8x128xf32>
    %114 = vector.shape_cast %108 : vector<8x128xf32> to vector<1x8x128xf32>
    tpu.vector_store %arg9[%c6, %c0_98, %c0_99], %114 {strides = array<i32>} : memref<8x8x128xf32, #tpu.memory_space<vmem>>, vector<1x8x128xf32>,
    %c6_100 = arith.constant 6 : index
    %c0_101 = arith.constant 0 : index
    %c0_102 = arith.constant 0 : index
    %115 = vector.load %arg1[%c6_100, %c0_101, %c0_102] : memref<8x8x128xbf16, #tpu.memory_space<vmem>>, vector<1x8x128xbf16>
    %116 = vector.shape_cast %115 : vector<1x8x128xbf16> to vector<8x128xbf16>
    %c0_103 = arith.constant 0 : index
    %c0_104 = arith.constant 0 : index
    %117 = vector.load %arg3[%c0_103, %c0_104] : memref<128x128xbf16, #tpu.memory_space<vmem>>, vector<128x128xbf16>
    %cst_105 = arith.constant dense<0.000000e+00> : vector<8x128xf32>
    %118 = tpu.matmul %116, %117, %cst_105 {dimension_numbers = #tpu.dot_dimension_numbers<[1], [0], [0], [1], [0, 0, 1, 1], [], []>} : vector<8x128xbf16>, vector<128x128xbf16>, vector<8x128xf32> -> vector<8x128xf32>
    %119 = arith.truncf %108 : vector<8x128xf32> to vector<8x128xbf16>
    %c0_106 = arith.constant 0 : index
    %c0_107 = arith.constant 0 : index
    %120 = vector.load %arg4[%c0_106, %c0_107] : memref<128x128xbf16, #tpu.memory_space<vmem>>, vector<128x128xbf16>
    %cst_108 = arith.constant dense<0.000000e+00> : vector<8x128xf32>
    %121 = tpu.matmul %119, %120, %cst_108 {dimension_numbers = #tpu.dot_dimension_numbers<[1], [0], [0], [1], [0, 0, 1, 1], [], []>} : vector<8x128xbf16>, vector<128x128xbf16>, vector<8x128xf32> -> vector<8x128xf32>
    %122 = arith.addf %118, %121 : vector<8x128xf32>
    %c0_109 = arith.constant 0 : index
    %c0_110 = arith.constant 0 : index
    %123 = vector.load %arg5[%c0_109, %c0_110] : memref<1x128xf32, #tpu.memory_space<vmem>>, vector<1x128xf32>
    %124 = vector.broadcast %123 : vector<1x128xf32> to vector<8x128xf32>
    %125 = arith.addf %122, %124 : vector<8x128xf32>
    %126 = math.tanh %125 : vector<8x128xf32>
    %c6_111 = arith.constant 6 : index
    %c0_112 = arith.constant 0 : index
    %c0_113 = arith.constant 0 : index
    %127 = vector.load %arg12[%c6_111, %c0_112, %c0_113] : memref<8x8x128xf32, #tpu.memory_space<vmem>>, vector<1x8x128xf32>
    %128 = vector.shape_cast %127 : vector<1x8x128xf32> to vector<8x128xf32>
    %129 = vector.shape_cast %126 : vector<8x128xf32> to vector<1x8x128xf32>
    tpu.vector_store %arg12[%c6_111, %c0_112, %c0_113], %129 {strides = array<i32>} : memref<8x8x128xf32, #tpu.memory_space<vmem>>, vector<1x8x128xf32>,
    %c7 = arith.constant 7 : index
    %c0_114 = arith.constant 0 : index
    %c0_115 = arith.constant 0 : index
    %130 = vector.load %arg9[%c7, %c0_114, %c0_115] : memref<8x8x128xf32, #tpu.memory_space<vmem>>, vector<1x8x128xf32>
    %131 = vector.shape_cast %130 : vector<1x8x128xf32> to vector<8x128xf32>
    %132 = vector.shape_cast %126 : vector<8x128xf32> to vector<1x8x128xf32>
    tpu.vector_store %arg9[%c7, %c0_114, %c0_115], %132 {strides = array<i32>} : memref<8x8x128xf32, #tpu.memory_space<vmem>>, vector<1x8x128xf32>,
    %c7_116 = arith.constant 7 : index
    %c0_117 = arith.constant 0 : index
    %c0_118 = arith.constant 0 : index
    %133 = vector.load %arg1[%c7_116, %c0_117, %c0_118] : memref<8x8x128xbf16, #tpu.memory_space<vmem>>, vector<1x8x128xbf16>
    %134 = vector.shape_cast %133 : vector<1x8x128xbf16> to vector<8x128xbf16>
    %c0_119 = arith.constant 0 : index
    %c0_120 = arith.constant 0 : index
    %135 = vector.load %arg3[%c0_119, %c0_120] : memref<128x128xbf16, #tpu.memory_space<vmem>>, vector<128x128xbf16>
    %cst_121 = arith.constant dense<0.000000e+00> : vector<8x128xf32>
    %136 = tpu.matmul %134, %135, %cst_121 {dimension_numbers = #tpu.dot_dimension_numbers<[1], [0], [0], [1], [0, 0, 1, 1], [], []>} : vector<8x128xbf16>, vector<128x128xbf16>, vector<8x128xf32> -> vector<8x128xf32>
    %137 = arith.truncf %126 : vector<8x128xf32> to vector<8x128xbf16>
    %c0_122 = arith.constant 0 : index
    %c0_123 = arith.constant 0 : index
    %138 = vector.load %arg4[%c0_122, %c0_123] : memref<128x128xbf16, #tpu.memory_space<vmem>>, vector<128x128xbf16>
    %cst_124 = arith.constant dense<0.000000e+00> : vector<8x128xf32>
    %139 = tpu.matmul %137, %138, %cst_124 {dimension_numbers = #tpu.dot_dimension_numbers<[1], [0], [0], [1], [0, 0, 1, 1], [], []>} : vector<8x128xbf16>, vector<128x128xbf16>, vector<8x128xf32> -> vector<8x128xf32>
    %140 = arith.addf %136, %139 : vector<8x128xf32>
    %c0_125 = arith.constant 0 : index
    %c0_126 = arith.constant 0 : index
    %141 = vector.load %arg5[%c0_125, %c0_126] : memref<1x128xf32, #tpu.memory_space<vmem>>, vector<1x128xf32>
    %142 = vector.broadcast %141 : vector<1x128xf32> to vector<8x128xf32>
    %143 = arith.addf %140, %142 : vector<8x128xf32>
    %144 = math.tanh %143 : vector<8x128xf32>
    %c7_127 = arith.constant 7 : index
    %c0_128 = arith.constant 0 : index
    %c0_129 = arith.constant 0 : index
    %145 = vector.load %arg12[%c7_127, %c0_128, %c0_129] : memref<8x8x128xf32, #tpu.memory_space<vmem>>, vector<1x8x128xf32>
    %146 = vector.shape_cast %145 : vector<1x8x128xf32> to vector<8x128xf32>
    %147 = vector.shape_cast %144 : vector<8x128xf32> to vector<1x8x128xf32>
    tpu.vector_store %arg12[%c7_127, %c0_128, %c0_129], %147 {strides = array<i32>} : memref<8x8x128xf32, #tpu.memory_space<vmem>>, vector<1x8x128xf32>,
    %c0_130 = arith.constant 0 : index
    %c0_131 = arith.constant 0 : index
    %148 = vector.load %arg11[%c0_130, %c0_131] : memref<8x128xf32, #tpu.memory_space<vmem>>, vector<8x128xf32>
    tpu.vector_store %arg11[%c0_130, %c0_131], %144 {strides = array<i32>} : memref<8x128xf32, #tpu.memory_space<vmem>>, vector<8x128xf32>,
    %c1_i32 = arith.constant 1 : i32
    %149 = arith.cmpi eq, %arg0, %c1_i32 : i32
    %150 = arith.extui %149 : i1 to i32
    %c0_i32_132 = arith.constant 0 : i32
    %151 = arith.cmpi ne, %150, %c0_i32_132 : i32
    scf.if %151 {
      %c0_144 = arith.constant 0 : index
      %c0_145 = arith.constant 0 : index
      %162 = vector.load %arg10[%c0_144, %c0_145] : memref<8x128xf32, #tpu.memory_space<vmem>>, vector<8x128xf32>
      tpu.vector_store %arg10[%c0_144, %c0_145], %144 {strides = array<i32>} : memref<8x128xf32, #tpu.memory_space<vmem>>, vector<8x128xf32>,
    } else {
    }
    %c0_133 = arith.constant 0 : index
    %c0_134 = arith.constant 0 : index
    %c0_135 = arith.constant 0 : index
    %152 = vector.load %arg12[%c0_133, %c0_134, %c0_135] : memref<8x8x128xf32, #tpu.memory_space<vmem>>, vector<8x8x128xf32>
    %153 = vector.shape_cast %152 : vector<8x8x128xf32> to vector<64x128xf32>
    %154 = arith.truncf %153 : vector<64x128xf32> to vector<64x128xbf16>
    %c0_136 = arith.constant 0 : index
    %c0_137 = arith.constant 0 : index
    %155 = vector.load %arg6[%c0_136, %c0_137] : memref<128x128xbf16, #tpu.memory_space<vmem>>, vector<128x128xbf16>
    %cst_138 = arith.constant dense<0.000000e+00> : vector<64x128xf32>
    %156 = tpu.matmul %154, %155, %cst_138 {dimension_numbers = #tpu.dot_dimension_numbers<[1], [0], [0], [1], [0, 0, 1, 1], [], []>} : vector<64x128xbf16>, vector<128x128xbf16>, vector<64x128xf32> -> vector<64x128xf32>
    %c0_139 = arith.constant 0 : index
    %c0_140 = arith.constant 0 : index
    %157 = vector.load %arg7[%c0_139, %c0_140] : memref<1x128xf32, #tpu.memory_space<vmem>>, vector<1x128xf32>
    %158 = vector.broadcast %157 : vector<1x128xf32> to vector<64x128xf32>
    %159 = arith.addf %156, %158 : vector<64x128xf32>
    %160 = vector.shape_cast %159 : vector<64x128xf32> to vector<8x8x128xf32>
    %c0_141 = arith.constant 0 : index
    %c0_142 = arith.constant 0 : index
    %c0_143 = arith.constant 0 : index
    %161 = vector.load %arg8[%c0_141, %c0_142, %c0_143] : memref<8x8x128xf32, #tpu.memory_space<vmem>>, vector<8x8x128xf32>
    tpu.vector_store %arg8[%c0_141, %c0_142, %c0_143], %160 {strides = array<i32>} : memref<8x8x128xf32, #tpu.memory_space<vmem>>, vector<8x8x128xf32>,
    return
  }
  func.func @transform_0(%arg0: i32) -> (i32, i32, i32) {
    %c0_i32 = arith.constant 0 : i32
    %c0_i32_0 = arith.constant 0 : i32
    %c0_i32_1 = arith.constant 0 : i32
    return %arg0, %c0_i32, %c0_i32_0 : i32, i32, i32
  }
  func.func @transform_1(%arg0: i32) -> (i32, i32) {
    %c0_i32 = arith.constant 0 : i32
    %c0_i32_0 = arith.constant 0 : i32
    %c0_i32_1 = arith.constant 0 : i32
    return %c0_i32, %c0_i32_0 : i32, i32
  }
  func.func @transform_2(%arg0: i32) -> (i32, i32) {
    %c0_i32 = arith.constant 0 : i32
    %c0_i32_0 = arith.constant 0 : i32
    %c0_i32_1 = arith.constant 0 : i32
    return %c0_i32, %c0_i32_0 : i32, i32
  }
  func.func @transform_3(%arg0: i32) -> (i32, i32) {
    %c0_i32 = arith.constant 0 : i32
    %c0_i32_0 = arith.constant 0 : i32
    %c0_i32_1 = arith.constant 0 : i32
    return %c0_i32, %c0_i32_0 : i32, i32
  }
  func.func @transform_4(%arg0: i32) -> (i32, i32) {
    %c0_i32 = arith.constant 0 : i32
    %c0_i32_0 = arith.constant 0 : i32
    %c0_i32_1 = arith.constant 0 : i32
    return %c0_i32, %c0_i32_0 : i32, i32
  }
  func.func @transform_5(%arg0: i32) -> (i32, i32) {
    %c0_i32 = arith.constant 0 : i32
    %c0_i32_0 = arith.constant 0 : i32
    %c0_i32_1 = arith.constant 0 : i32
    return %c0_i32, %c0_i32_0 : i32, i32
  }
  func.func @transform_6(%arg0: i32) -> (i32, i32) {
    %c0_i32 = arith.constant 0 : i32
    %c0_i32_0 = arith.constant 0 : i32
    %c0_i32_1 = arith.constant 0 : i32
    return %c0_i32, %c0_i32_0 : i32, i32
  }
  func.func @transform_7(%arg0: i32) -> (i32, i32, i32) {
    %c0_i32 = arith.constant 0 : i32
    %c0_i32_0 = arith.constant 0 : i32
    %c0_i32_1 = arith.constant 0 : i32
    return %arg0, %c0_i32, %c0_i32_0 : i32, i32, i32
  }
  func.func @transform_8(%arg0: i32) -> (i32, i32, i32) {
    %c0_i32 = arith.constant 0 : i32
    %c0_i32_0 = arith.constant 0 : i32
    %c0_i32_1 = arith.constant 0 : i32
    return %arg0, %c0_i32, %c0_i32_0 : i32, i32, i32
  }
  func.func @transform_9(%arg0: i32) -> (i32, i32) {
    %c0_i32 = arith.constant 0 : i32
    %c0_i32_0 = arith.constant 0 : i32
    %c0_i32_1 = arith.constant 0 : i32
    return %c0_i32, %c0_i32_0 : i32, i32
  }
}

</mosaic_0001>

<llo_original>
// kernel: tpu_custom_call.1
$region0: #{tpu_custom_call.1}
  #allocation0 [shape = 'u32[]', space=smem, size = 0x4, offset = 0x4, fixed_abs, tag = 'smem constant byte address 0x4 - core index']
  #allocation1 [shape = 'u32[144,128]{1,0:T(1,128)}', space=vmem, size = 0x12000, scoped, tag = 'internal scratch']
  #allocation2 [shape = 'f32[8,128]{1,0:T(8,128)}', space=vmem, size = 0x1000, scoped, tag = 'scratch operand']
  #allocation3 [shape = 'f32[8,8,128]{2,1,0:T(8,128)}', space=vmem, size = 0x8000, scoped, tag = 'scratch operand']
  %s0 = inlined_call_operand.hbm [shape: bf16[16,8,128], index: 0, kind: input, shape index: {}]
  %s1 = inlined_call_operand.hbm [shape: f32[8,128], index: 1, kind: input, shape index: {}]
  %s2 = inlined_call_operand.hbm [shape: bf16[128,128], index: 2, kind: input, shape index: {}]
  %s3 = inlined_call_operand.hbm [shape: bf16[128,128], index: 3, kind: input, shape index: {}]
  %s4 = inlined_call_operand.vmem [shape: f32[1,128], index: 4, kind: input, shape index: {}]
  %s5 = inlined_call_operand.hbm [shape: bf16[128,128], index: 5, kind: input, shape index: {}]
  %s6 = inlined_call_operand.vmem [shape: f32[1,128], index: 6, kind: input, shape index: {}]
  %s7 = inlined_call_operand.hbm [shape: f32[16,8,128], index: 7, kind: output, shape index: {0}]
  %s8 = inlined_call_operand.hbm [shape: f32[16,8,128], index: 8, kind: output, shape index: {1}]
  %s9 = inlined_call_operand.hbm [shape: f32[8,128], index: 9, kind: output, shape index: {2}]
  %10 = xla_tuple %s7, %s8, %s9
  %s11 = sld [smem:[#allocation0]]
  $region105: #{tpu_custom_call.1} parent=0
    _
  %s13 = ssub.s32 1, %s11
  %s14 = scalar_select 0, %s13, %s11
  $region1: #{tpu_custom_call.1} parent=0
    #allocation4 [shape = 'u8[32768]{0}', space=vmem, size = 0x8000, scoped, tag = 'input window, operand 0']
    #allocation5 [shape = 's32[2]{0}', space=sflag, size = 0x8, scoped, tag = 'scoped memory for tpu_custom_call.1']
    #allocation6 [shape = 's32[2]{0}', space=sflag, size = 0x8, scoped, tag = 'scoped memory for tpu_custom_call.1']
    #allocation7 [shape = 'u8[4096]{0}', space=vmem, size = 0x1000, scoped, tag = 'input window, operand 1, single buffered']
    #allocation8 [shape = 's32[1]{0}', space=sflag, size = 0x4, scoped, tag = 'scoped memory for tpu_custom_call.1']
    #allocation9 [shape = 'u8[32768]{0}', space=vmem, size = 0x8000, scoped, tag = 'input window, operand 2, single buffered']
    #allocation10 [shape = 'u8[32768]{0}', space=vmem, size = 0x8000, scoped, tag = 'input window, operand 3, single buffered']
    #allocation11 [shape = 's32[1]{0}', space=sflag, size = 0x4, scoped, tag = 'scoped memory for tpu_custom_call.1']
    #allocation12 [shape = 'u8[32768]{0}', space=vmem, size = 0x8000, scoped, tag = 'input window, operand 5, single buffered']
    #allocation13 [shape = 'u8[65536]{0}', space=vmem, size = 0x10000, scoped, tag = 'output window, operand 0']
    #allocation14 [shape = 'u8[65536]{0}', space=vmem, size = 0x10000, scoped, tag = 'output window, operand 1']
    #allocation15 [shape = 's32[2]{0}', space=sflag, size = 0x8, scoped, tag = 'scoped memory for tpu_custom_call.1']
    #allocation16 [shape = 'u8[4096]{0}', space=vmem, size = 0x1000, scoped, tag = 'output window, operand 2, single buffered']
    %15 = vsyncpa [#allocation5], 0
    %s16 = scalar_lea.sflag [#allocation5], 1
    %17 = vsyncpa %s16, 0
    %18 = vsyncpa [#allocation8], 0
    %19 = vsyncpa [#allocation11], 0
    %20 = vsyncpa [#allocation6], 0
    %s21 = scalar_lea.sflag [#allocation6], 1
    %22 = vsyncpa %s21, 0
    %23 = vsyncpa [#allocation15], 0
    %s24 = scalar_lea.sflag [#allocation15], 1
    %25 = vsyncpa %s24, 0
    loop: start=0, step=1, limit=4
    $region2: #{tpu_custom_call.1} parent=1 // loop_pre_header
      _
    $region3: #{tpu_custom_call.1} parent=1 // loop_header
      %s27 = sphi 0, %s31
      %p28 = scmp.ge.s32.totalorder %s27, 4
      %s37 = sphi 0, %s39
      %s40 = sphi 0, %s37
      %s41 = sphi 0, %s40
      %s57 = sphi 0, %s41
      %s61 = sphi 0, %s61
      %s63 = sphi 0, %s61
      %s64 = sphi 0, %s63
      %s78 = sphi 0, %s64
      %s82 = sphi 0, %s82
      %s84 = sphi 0, %s82
      %s85 = sphi 0, %s84
      %s99 = sphi 0, %s85
      %s103 = sphi 0, %s103
      %s105 = sphi 0, %s103
      %s106 = sphi 0, %s105
      %s120 = sphi 0, %s106
      %s124 = sphi 0, %s124
      %s126 = sphi 0, %s124
      %s127 = sphi 0, %s126
      %s141 = sphi 0, %s127
      %s145 = sphi 0, %s145
      %s147 = sphi 0, %s145
      %s148 = sphi 0, %s147
      %s162 = sphi 0, %s148
      %s166 = sphi 0, %s166
      %s168 = sphi 0, %s166
      %s169 = sphi 0, %s168
      %s183 = sphi 0, %s169
      %s189 = sphi 0, %s191
      %s192 = sphi 0, %s189
      %s193 = sphi 0, %s192
      %s209 = sphi 0, %s193
      %s215 = sphi 0, %s217
      %s218 = sphi 0, %s215
      %s219 = sphi 0, %s218
      %s235 = sphi 0, %s219
      %s239 = sphi 0, %s239
      %s241 = sphi 0, %s239
      %s242 = sphi 0, %s241
      %s256 = sphi 0, %s242
    $region4: #{tpu_custom_call.1} parent=1 // loop_header_branch
      %30 = sbr.rel (%p28) target = $region8
    $region5: #{tpu_custom_call.1} parent=1 // loop_body
      %s32 = ssub.s32 %s27, 1
      %s33 = ssub.s32 %s27, 2
      %s34 = sadd.s32 %s27, 1
      %s35 = ssub.s32 %s27, %s34
      %p36 = scmp.eq.s32.totalorder %s35, 0
      %s38 = sadd.s32 %s37, 1
      %s39 = scalar_select %p36, %s37, %s38
      %p42 = pneg %p36
      %p43 = scmp.eq.s32.totalorder %s27, 1
      %p44 = por %p42, %p43
      %p45 = scmp.ne.s32.totalorder %s37, %s40
      %p46 = scmp.eq.s32.totalorder %s27, 0
      %p47 = por %p45, %p46
      %p48 = scmp.ne.s32.totalorder %s37, %s40
      %p49 = scmp.eq.s32.totalorder %s32, 1
      %p50 = por %p48, %p49
      %p51 = scmp.ne.s32.totalorder %s40, %s41
      %p52 = scmp.eq.s32.totalorder %s32, 0
      %p53 = por %p51, %p52
      %p54 = scmp.ne.s32.totalorder %s40, %s41
      %p55 = scmp.eq.s32.totalorder %s33, 1
      %p56 = por %p54, %p55
      %p58 = scmp.ne.s32.totalorder %s41, %s57
      %p59 = scmp.eq.s32.totalorder %s33, 0
      %p60 = por %p58, %p59
      %s62 = sadd.s32 %s61, 1
      %p65 = scmp.eq.s32.totalorder %s27, 1
      %p66 = scmp.ne.s32.totalorder %s61, %s63
      %p67 = scmp.eq.s32.totalorder %s27, 0
      %p68 = por %p66, %p67
      %p69 = scmp.ne.s32.totalorder %s61, %s63
      %p70 = scmp.eq.s32.totalorder %s32, 1
      %p71 = por %p69, %p70
      %p72 = scmp.ne.s32.totalorder %s63, %s64
      %p73 = scmp.eq.s32.totalorder %s32, 0
      %p74 = por %p72, %p73
      %p75 = scmp.ne.s32.totalorder %s63, %s64
      %p76 = scmp.eq.s32.totalorder %s33, 1
      %p77 = por %p75, %p76
      %p79 = scmp.ne.s32.totalorder %s64, %s78
      %p80 = scmp.eq.s32.totalorder %s33, 0
      %p81 = por %p79, %p80
      %s83 = sadd.s32 %s82, 1
      %p86 = scmp.eq.s32.totalorder %s27, 1
      %p87 = scmp.ne.s32.totalorder %s82, %s84
      %p88 = scmp.eq.s32.totalorder %s27, 0
      %p89 = por %p87, %p88
      %p90 = scmp.ne.s32.totalorder %s82, %s84
      %p91 = scmp.eq.s32.totalorder %s32, 1
      %p92 = por %p90, %p91
      %p93 = scmp.ne.s32.totalorder %s84, %s85
      %p94 = scmp.eq.s32.totalorder %s32, 0
      %p95 = por %p93, %p94
      %p96 = scmp.ne.s32.totalorder %s84, %s85
      %p97 = scmp.eq.s32.totalorder %s33, 1
      %p98 = por %p96, %p97
      %p100 = scmp.ne.s32.totalorder %s85, %s99
      %p101 = scmp.eq.s32.totalorder %s33, 0
      %p102 = por %p100, %p101
      %s104 = sadd.s32 %s103, 1
      %p107 = scmp.eq.s32.totalorder %s27, 1
      %p108 = scmp.ne.s32.totalorder %s103, %s105
      %p109 = scmp.eq.s32.totalorder %s27, 0
      %p110 = por %p108, %p109
      %p111 = scmp.ne.s32.totalorder %s103, %s105
      %p112 = scmp.eq.s32.totalorder %s32, 1
      %p113 = por %p111, %p112
      %p114 = scmp.ne.s32.totalorder %s105, %s106
      %p115 = scmp.eq.s32.totalorder %s32, 0
      %p116 = por %p114, %p115
      %p117 = scmp.ne.s32.totalorder %s105, %s106
      %p118 = scmp.eq.s32.totalorder %s33, 1
      %p119 = por %p117, %p118
      %p121 = scmp.ne.s32.totalorder %s106, %s120
      %p122 = scmp.eq.s32.totalorder %s33, 0
      %p123 = por %p121, %p122
      %s125 = sadd.s32 %s124, 1
      %p128 = scmp.eq.s32.totalorder %s27, 1
      %p129 = scmp.ne.s32.totalorder %s124, %s126
      %p130 = scmp.eq.s32.totalorder %s27, 0
      %p131 = por %p129, %p130
      %p132 = scmp.ne.s32.totalorder %s124, %s126
      %p133 = scmp.eq.s32.totalorder %s32, 1
      %p134 = por %p132, %p133
      %p135 = scmp.ne.s32.totalorder %s126, %s127
      %p136 = scmp.eq.s32.totalorder %s32, 0
      %p137 = por %p135, %p136
      %p138 = scmp.ne.s32.totalorder %s126, %s127
      %p139 = scmp.eq.s32.totalorder %s33, 1
      %p140 = por %p138, %p139
      %p142 = scmp.ne.s32.totalorder %s127, %s141
      %p143 = scmp.eq.s32.totalorder %s33, 0
      %p144 = por %p142, %p143
      %s146 = sadd.s32 %s145, 1
      %p149 = scmp.eq.s32.totalorder %s27, 1
      %p150 = scmp.ne.s32.totalorder %s145, %s147
      %p151 = scmp.eq.s32.totalorder %s27, 0
      %p152 = por %p150, %p151
      %p153 = scmp.ne.s32.totalorder %s145, %s147
      %p154 = scmp.eq.s32.totalorder %s32, 1
      %p155 = por %p153, %p154
      %p156 = scmp.ne.s32.totalorder %s147, %s148
      %p157 = scmp.eq.s32.totalorder %s32, 0
      %p158 = por %p156, %p157
      %p159 = scmp.ne.s32.totalorder %s147, %s148
      %p160 = scmp.eq.s32.totalorder %s33, 1
      %p161 = por %p159, %p160
      %p163 = scmp.ne.s32.totalorder %s148, %s162
      %p164 = scmp.eq.s32.totalorder %s33, 0
      %p165 = por %p163, %p164
      %s167 = sadd.s32 %s166, 1
      %p170 = scmp.eq.s32.totalorder %s27, 1
      %p171 = scmp.ne.s32.totalorder %s166, %s168
      %p172 = scmp.eq.s32.totalorder %s27, 0
      %p173 = por %p171, %p172
      %p174 = scmp.ne.s32.totalorder %s166, %s168
      %p175 = scmp.eq.s32.totalorder %s32, 1
      %p176 = por %p174, %p175
      %p177 = scmp.ne.s32.totalorder %s168, %s169
      %p178 = scmp.eq.s32.totalorder %s32, 0
      %p179 = por %p177, %p178
      %p180 = scmp.ne.s32.totalorder %s168, %s169
      %p181 = scmp.eq.s32.totalorder %s33, 1
      %p182 = por %p180, %p181
      %p184 = scmp.ne.s32.totalorder %s169, %s183
      %p185 = scmp.eq.s32.totalorder %s33, 0
      %p186 = por %p184, %p185
      %s187 = ssub.s32 %s27, %s34
      %p188 = scmp.eq.s32.totalorder %s187, 0
      %s190 = sadd.s32 %s189, 1
      %s191 = scalar_select %p188, %s189, %s190
      %p194 = pneg %p188
      %p195 = scmp.eq.s32.totalorder %s27, 1
      %p196 = por %p194, %p195
      %p197 = scmp.ne.s32.totalorder %s189, %s192
      %p198 = scmp.eq.s32.totalorder %s27, 0
      %p199 = por %p197, %p198
      %p200 = scmp.ne.s32.totalorder %s189, %s192
      %p201 = scmp.eq.s32.totalorder %s32, 1
      %p202 = por %p200, %p201
      %p203 = scmp.ne.s32.totalorder %s192, %s193
      %p204 = scmp.eq.s32.totalorder %s32, 0
      %p205 = por %p203, %p204
      %p206 = scmp.ne.s32.totalorder %s192, %s193
      %p207 = scmp.eq.s32.totalorder %s33, 1
      %p208 = por %p206, %p207
      %p210 = scmp.ne.s32.totalorder %s193, %s209
      %p211 = scmp.eq.s32.totalorder %s33, 0
      %p212 = por %p210, %p211
      %s213 = ssub.s32 %s27, %s34
      %p214 = scmp.eq.s32.totalorder %s213, 0
      %s216 = sadd.s32 %s215, 1
      %s217 = scalar_select %p214, %s215, %s216
      %p220 = pneg %p214
      %p221 = scmp.eq.s32.totalorder %s27, 1
      %p222 = por %p220, %p221
      %p223 = scmp.ne.s32.totalorder %s215, %s218
      %p224 = scmp.eq.s32.totalorder %s27, 0
      %p225 = por %p223, %p224
      %p226 = scmp.ne.s32.totalorder %s215, %s218
      %p227 = scmp.eq.s32.totalorder %s32, 1
      %p228 = por %p226, %p227
      %p229 = scmp.ne.s32.totalorder %s218, %s219
      %p230 = scmp.eq.s32.totalorder %s32, 0
      %p231 = por %p229, %p230
      %p232 = scmp.ne.s32.totalorder %s218, %s219
      %p233 = scmp.eq.s32.totalorder %s33, 1
      %p234 = por %p232, %p233
      %p236 = scmp.ne.s32.totalorder %s219, %s235
      %p237 = scmp.eq.s32.totalorder %s33, 0
      %p238 = por %p236, %p237
      %s240 = sadd.s32 %s239, 1
      %p243 = scmp.eq.s32.totalorder %s27, 1
      %p244 = scmp.ne.s32.totalorder %s239, %s241
      %p245 = scmp.eq.s32.totalorder %s27, 0
      %p246 = por %p244, %p245
      %p247 = scmp.ne.s32.totalorder %s239, %s241
      %p248 = scmp.eq.s32.totalorder %s32, 1
      %p249 = por %p247, %p248
      %p250 = scmp.ne.s32.totalorder %s241, %s242
      %p251 = scmp.eq.s32.totalorder %s32, 0
      %p252 = por %p250, %p251
      %p253 = scmp.ne.s32.totalorder %s241, %s242
      %p254 = scmp.eq.s32.totalorder %s33, 1
      %p255 = por %p253, %p254
      %p257 = scmp.ne.s32.totalorder %s242, %s256
      %p258 = scmp.eq.s32.totalorder %s33, 0
      %p259 = por %p257, %p258
      %p260 = scmp.le.s32.totalorder 1, %s27
      %p261 = scmp.lt.s32.totalorder %s27, 3
      %p262 = pnand %p260, %p261
      %p263 = pneg %p262
      // Predicated region
      $region9: #{tpu_custom_call.1} parent=5 // pred_check
        _
      $region10: #{tpu_custom_call.1} parent=5 // pred_check_branch
        %265 = sbr.rel (%p262) target = $region12
      $region11: #{tpu_custom_call.1} parent=5 // pred_region
        %s266 = ssub.s32 %s27, 1
        // Predicated region
        $region13: #{tpu_custom_call.1} parent=11 // pred_check
          %p267 = pneg %p74
        $region14: #{tpu_custom_call.1} parent=11 // pred_check_branch
          %269 = sbr.rel (%p267) target = $region16
        $region15: #{tpu_custom_call.1} parent=11 // pred_region
          %s271 = ssub.s32 128, 128
          %272 = vsyncadd [#allocation8], %s271
          %s274 = sshll.u32 [#allocation7], 4
          %s275 = int_to_ptr.vmem [resolvable:$true] %s274
          %277 = dma.hbm_to_vmem [thread:$0]  %s1, 128, %s275, [#allocation8]
        $region16: #{tpu_custom_call.1} parent=11 // pred_fallthru
          _
        // Predicated region
        $region17: #{tpu_custom_call.1} parent=11 // pred_check
          %p278 = pneg %p95
        $region18: #{tpu_custom_call.1} parent=11 // pred_check_branch
          %280 = sbr.rel (%p278) target = $region20
        $region19: #{tpu_custom_call.1} parent=11 // pred_region
          %s282 = ssub.s32 1024, 1024
          %283 = vsyncadd [#allocation8], %s282
          %s284 = sshll.u32 [#allocation9], 4
          %s285 = int_to_ptr.vmem [resolvable:$true] %s284
          %290 = dma.hbm_to_vmem [thread:$0]  %s2, 1024, %s285, [#allocation8], 64, 64, 4
        $region20: #{tpu_custom_call.1} parent=11 // pred_fallthru
          _
        // Predicated region
        $region21: #{tpu_custom_call.1} parent=11 // pred_check
          %p291 = pneg %p116
        $region22: #{tpu_custom_call.1} parent=11 // pred_check_branch
          %293 = sbr.rel (%p291) target = $region24
        $region23: #{tpu_custom_call.1} parent=11 // pred_region
          %s295 = ssub.s32 1024, 1024
          %296 = vsyncadd [#allocation11], %s295
          %s297 = sshll.u32 [#allocation10], 4
          %s298 = int_to_ptr.vmem [resolvable:$true] %s297
          %303 = dma.hbm_to_vmem [thread:$0]  %s3, 1024, %s298, [#allocation11], 64, 64, 4
        $region24: #{tpu_custom_call.1} parent=11 // pred_fallthru
          _
        // Predicated region
        $region25: #{tpu_custom_call.1} parent=11 // pred_check
          %p304 = pneg %p137
        $region26: #{tpu_custom_call.1} parent=11 // pred_check_branch
          %306 = sbr.rel (%p304) target = $region28
        $region27: #{tpu_custom_call.1} parent=11 // pred_region
          _
        $region28: #{tpu_custom_call.1} parent=11 // pred_fallthru
          _
        // Predicated region
        $region29: #{tpu_custom_call.1} parent=11 // pred_check
          %p307 = pneg %p158
        $region30: #{tpu_custom_call.1} parent=11 // pred_check_branch
          %309 = sbr.rel (%p307) target = $region32
        $region31: #{tpu_custom_call.1} parent=11 // pred_region
          %s311 = ssub.s32 1024, 1024
          %312 = vsyncadd [#allocation11], %s311
          %s313 = sshll.u32 [#allocation12], 4
          %s314 = int_to_ptr.vmem [resolvable:$true] %s313
          %319 = dma.hbm_to_vmem [thread:$0]  %s5, 1024, %s314, [#allocation11], 64, 64, 4
        $region32: #{tpu_custom_call.1} parent=11 // pred_fallthru
          _
        // Predicated region
        $region33: #{tpu_custom_call.1} parent=11 // pred_check
          %p320 = pneg %p179
        $region34: #{tpu_custom_call.1} parent=11 // pred_check_branch
          %322 = sbr.rel (%p320) target = $region36
        $region35: #{tpu_custom_call.1} parent=11 // pred_region
          _
        $region36: #{tpu_custom_call.1} parent=11 // pred_fallthru
          _
      $region12: #{tpu_custom_call.1} parent=5 // pred_fallthru
        _
      %p323 = scmp.lt.s32.totalorder %s27, 2
      // Predicated region
      $region37: #{tpu_custom_call.1} parent=5 // pred_check
        %p324 = pneg %p323
      $region38: #{tpu_custom_call.1} parent=5 // pred_check_branch
        %326 = sbr.rel (%p324) target = $region40
      $region39: #{tpu_custom_call.1} parent=5 // pred_region
        // Predicated region
        $region41: #{tpu_custom_call.1} parent=39 // pred_check
          %p327 = pneg %p47
        $region42: #{tpu_custom_call.1} parent=39 // pred_check_branch
          %329 = sbr.rel (%p327) target = $region44
        $region43: #{tpu_custom_call.1} parent=39 // pred_region
          %s330 = sand.u32 %s37, 1
          %s331 = scalar_lea.sflag [#allocation5], %s330
          %s332 = sand.u32 %s37, 1
          %s333 = smul.addr %s332, 32
          %s334 = scalar_lea.vmem [#allocation4], %s333
          %s335 = smul.u32 8, %s27
          %s337 = ssub.s32 512, 512
          %338 = vsyncadd %s331, %s337
          %s339 = smul.addr %s335, 64
          %s340 = scalar_lea.hbm %s0, %s339
          %s341 = sshll.u32 %s334, 4
          %s342 = int_to_ptr.vmem [resolvable:$true] %s341
          %347 = dma.hbm_to_vmem [thread:$0]  %s340, 512, %s342, %s331, 64, 64, 4
        $region44: #{tpu_custom_call.1} parent=39 // pred_fallthru
          _
      $region40: #{tpu_custom_call.1} parent=5 // pred_fallthru
        _
      %p348 = scmp.le.s32.totalorder 1, %s27
      %p349 = scmp.lt.s32.totalorder %s27, 3
      %p350 = pnand %p348, %p349
      %p351 = pneg %p350
      // Predicated region
      $region45: #{tpu_custom_call.1} parent=5 // pred_check
        _
      $region46: #{tpu_custom_call.1} parent=5 // pred_check_branch
        %353 = sbr.rel (%p350) target = $region48
      $region47: #{tpu_custom_call.1} parent=5 // pred_region
        %s354 = ssub.s32 %s27, 1
        %s355 = sand.u32 %s40, 1
        %s356 = scalar_lea.sflag [#allocation5], %s355
        %s357 = sand.u32 %s40, 1
        %s358 = smul.addr %s357, 32
        %s359 = scalar_lea.vmem [#allocation4], %s358
        // Predicated region
        $region49: #{tpu_custom_call.1} parent=47 // pred_check
          %p360 = pneg %p53
        $region50: #{tpu_custom_call.1} parent=47 // pred_check_branch
          %362 = sbr.rel (%p360) target = $region52
        $region51: #{tpu_custom_call.1} parent=47 // pred_region
          %363 = dma.done %s356, 512
        $region52: #{tpu_custom_call.1} parent=47 // pred_fallthru
          _
        // Predicated region
        $region53: #{tpu_custom_call.1} parent=47 // pred_check
          %p364 = pneg %p74
        $region54: #{tpu_custom_call.1} parent=47 // pred_check_branch
          %366 = sbr.rel (%p364) target = $region56
        $region55: #{tpu_custom_call.1} parent=47 // pred_region
          %367 = dma.done [#allocation8], 128
        $region56: #{tpu_custom_call.1} parent=47 // pred_fallthru
          _
        // Predicated region
        $region57: #{tpu_custom_call.1} parent=47 // pred_check
          %p368 = pneg %p95
        $region58: #{tpu_custom_call.1} parent=47 // pred_check_branch
          %370 = sbr.rel (%p368) target = $region60
        $region59: #{tpu_custom_call.1} parent=47 // pred_region
          %371 = dma.done [#allocation8], 1024
        $region60: #{tpu_custom_call.1} parent=47 // pred_fallthru
          _
        // Predicated region
        $region61: #{tpu_custom_call.1} parent=47 // pred_check
          %p372 = pneg %p116
        $region62: #{tpu_custom_call.1} parent=47 // pred_check_branch
          %374 = sbr.rel (%p372) target = $region64
        $region63: #{tpu_custom_call.1} parent=47 // pred_region
          %375 = dma.done [#allocation11], 1024
        $region64: #{tpu_custom_call.1} parent=47 // pred_fallthru
          _
        // Predicated region
        $region65: #{tpu_custom_call.1} parent=47 // pred_check
          %p376 = pneg %p158
        $region66: #{tpu_custom_call.1} parent=47 // pred_check_branch
          %378 = sbr.rel (%p376) target = $region68
        $region67: #{tpu_custom_call.1} parent=47 // pred_region
          %379 = dma.done [#allocation11], 1024
        $region68: #{tpu_custom_call.1} parent=47 // pred_fallthru
          _
        %s380 = sand.u32 %s40, 1
        %s381 = scalar_lea.sflag [#allocation5], %s380
        %s382 = sand.u32 %s40, 1
        %s383 = smul.addr %s382, 32
        %s384 = scalar_lea.vmem [#allocation4], %s383
        %p385 = pneg %p53
        %p386 = pneg %p50
        %p387 = pneg %p74
        %p388 = pneg %p71
        %p389 = pneg %p95
        %p390 = pneg %p92
        %p391 = pneg %p116
        %p392 = pneg %p113
        %p393 = pneg %p137
        %p394 = pneg %p134
        %p395 = pneg %p158
        %p396 = pneg %p155
        %p397 = pneg %p179
        %p398 = pneg %p176
        %p399 = pneg %p205
        %p400 = pneg %p202
        %s401 = sand.u32 %s192, 1
        %s402 = scalar_lea.sflag [#allocation6], %s401
        %s403 = sand.u32 %s192, 1
        %s404 = smul.addr %s403, 64
        %s405 = scalar_lea.vmem [#allocation13], %s404
        %p406 = pneg %p231
        %p407 = pneg %p228
        %s408 = sand.u32 %s32, 1
        %s409 = scalar_lea.sflag [#allocation15], %s408
        %s410 = sand.u32 %s218, 1
        %s411 = smul.addr %s410, 64
        %s412 = scalar_lea.vmem [#allocation14], %s411
        %p413 = pneg %p252
        %p414 = pneg %p249
        %s415 = smul.u32 8, %s32
        %s416 = smul.u32 8, %s32
        %s417 = smul.u32 8, %s32
        %p419 = scmp.eq.s32.totalorder %s32, 0
        // Predicated region
        $region69: #{tpu_custom_call.1} parent=47 // pred_check
          %p420 = pneg %p419
        $region70: #{tpu_custom_call.1} parent=47 // pred_check_branch
          %422 = sbr.rel (%p420) target = $region72
        $region71: #{tpu_custom_call.1} parent=47 // pred_region
          %v423 = vld [vmem:[#allocation7] sm:$0xff]
          %424 = vst [vmem:[#allocation2] sm:$0xff] %v423
        $region72: #{tpu_custom_call.1} parent=47 // pred_fallthru
          _
        %v425 = vld [vmem:[#allocation2] sm:$0xff]
        %426 = vst [vmem:[%s412] sm:$0xff] %v425
        %v427 = vld [vmem:[%s359] sm:$0xf]
        %v428 = vld [vmem:[#allocation9] sm:$0xf]
        %v429 = vld [vmem:[#allocation9 + $0x4] sm:$0xf]
        %v430 = vld [vmem:[#allocation9 + $0x8] sm:$0xf]
        %v431 = vld [vmem:[#allocation9 + $0xc] sm:$0xf]
        %v432 = vld [vmem:[#allocation9 + $0x10] sm:$0xf]
        %v433 = vld [vmem:[#allocation9 + $0x14] sm:$0xf]
        %v434 = vld [vmem:[#allocation9 + $0x18] sm:$0xf]
        %v435 = vld [vmem:[#allocation9 + $0x1c] sm:$0xf]
        %v436 = vld [vmem:[#allocation9 + $0x20] sm:$0xf]
        %v437 = vld [vmem:[#allocation9 + $0x24] sm:$0xf]
        %v438 = vld [vmem:[#allocation9 + $0x28] sm:$0xf]
        %v439 = vld [vmem:[#allocation9 + $0x2c] sm:$0xf]
        %v440 = vld [vmem:[#allocation9 + $0x30] sm:$0xf]
        %v441 = vld [vmem:[#allocation9 + $0x34] sm:$0xf]
        %v442 = vld [vmem:[#allocation9 + $0x38] sm:$0xf]
        %v443 = vld [vmem:[#allocation9 + $0x3c] sm:$0xf]
        %v444 = vpack.c.bf16 %v425, %v425
        %v445 = vld [vmem:[#allocation10] sm:$0xf]
        %v446 = vld [vmem:[#allocation10 + $0x4] sm:$0xf]
        %v447 = vld [vmem:[#allocation10 + $0x8] sm:$0xf]
        %v448 = vld [vmem:[#allocation10 + $0xc] sm:$0xf]
        %v449 = vld [vmem:[#allocation10 + $0x10] sm:$0xf]
        %v450 = vld [vmem:[#allocation10 + $0x14] sm:$0xf]
        %v451 = vld [vmem:[#allocation10 + $0x18] sm:$0xf]
        %v452 = vld [vmem:[#allocation10 + $0x1c] sm:$0xf]
        %v453 = vld [vmem:[#allocation10 + $0x20] sm:$0xf]
        %v454 = vld [vmem:[#allocation10 + $0x24] sm:$0xf]
        %v455 = vld [vmem:[#allocation10 + $0x28] sm:$0xf]
        %v456 = vld [vmem:[#allocation10 + $0x2c] sm:$0xf]
        %v457 = vld [vmem:[#allocation10 + $0x30] sm:$0xf]
        %v458 = vld [vmem:[#allocation10 + $0x34] sm:$0xf]
        %v459 = vld [vmem:[#allocation10 + $0x38] sm:$0xf]
        %v460 = vld [vmem:[#allocation10 + $0x3c] sm:$0xf]
        %v477 = vunpack.c.l.b16 %v445
        %v478 = vunpack.c.l.b16 %v446
        %v479 = vunpack.c.l.b16 %v447
        %v480 = vunpack.c.l.b16 %v448
        %v481 = vunpack.c.l.b16 %v449
        %v482 = vunpack.c.l.b16 %v450
        %v483 = vunpack.c.l.b16 %v451
        %v484 = vunpack.c.l.b16 %v452
        %v485 = vunpack.c.l.b16 %v453
        %v486 = vunpack.c.l.b16 %v454
        %v487 = vunpack.c.l.b16 %v455
        %v488 = vunpack.c.l.b16 %v456
        %v489 = vunpack.c.l.b16 %v457
        %v490 = vunpack.c.l.b16 %v458
        %v491 = vunpack.c.l.b16 %v459
        %v492 = vunpack.c.l.b16 %v460
        %v493 = vpack.c.b16 %v478, %v477
        %v494 = vpack.c.b16 %v480, %v479
        %v495 = vpack.c.b16 %v482, %v481
        %v496 = vpack.c.b16 %v484, %v483
        %v497 = vpack.c.b16 %v486, %v485
        %v498 = vpack.c.b16 %v488, %v487
        %v499 = vpack.c.b16 %v490, %v489
        %v500 = vpack.c.b16 %v492, %v491
        %509 = vmatprep.subr.bf16.mxu0 0
        %510 = vmatpush1.bf16.msra.mxu0 %v500
        %511 = vmatprep.subr.bf16.mxu0 0
        %512 = vmatpush1.bf16.msra.mxu0 %v499
        %513 = vmatprep.subr.bf16.mxu0 0
        %514 = vmatpush1.bf16.msra.mxu0 %v498
        %515 = vmatprep.subr.bf16.mxu0 0
        %516 = vmatpush1.bf16.msra.mxu0 %v497
        %517 = vmatprep.subr.bf16.mxu0 0
        %518 = vmatpush1.bf16.msra.mxu0 %v496
        %519 = vmatprep.subr.bf16.mxu0 0
        %520 = vmatpush1.bf16.msra.mxu0 %v495
        %521 = vmatprep.subr.bf16.mxu0 0
        %522 = vmatpush1.bf16.msra.mxu0 %v494
        %523 = vmatprep.subr.bf16.mxu0 0
        %524 = vmatpush1.bf16.msra.mxu0 %v493
        %525 = vmatprep.subr.bf16.mxu0 0
        %526 = vmatpush2.bf16.msra.mxu0 0
        %527 = vmatprep.subr.bf16.mxu0 0
        %528 = vmatpush2.bf16.msra.mxu0 0
        %529 = vmatprep.subr.bf16.mxu0 0
        %530 = vmatpush2.bf16.msra.mxu0 0
        %531 = vmatprep.subr.bf16.mxu0 0
        %532 = vmatpush2.bf16.msra.mxu0 0
        %533 = vmatprep.subr.bf16.mxu0 0
        %534 = vmatpush2.bf16.msra.mxu0 0
        %535 = vmatprep.subr.bf16.mxu0 0
        %536 = vmatpush2.bf16.msra.mxu0 0
        %537 = vmatprep.subr.bf16.mxu0 0
        %538 = vmatpush2.bf16.msra.mxu0 0
        %539 = vmatprep.subr.bf16.mxu0 0
        %540 = vmatpush2.bf16.msra.mxu0 0
        %541 = vmatprep.mubr.bf16.mxu0 0
        %542 = vmatmul.mubr.bf16.gmra.mxu0 %v444
        %v543 = vpop.f32.mrf.mxu0
        %v544 = vadd.f32 0.0, %v543
        %v545 = vpop.f32.mrf.mxu0
        %v546 = vpop.f32.mrf.mxu0
        %v547 = vpop.f32.mrf.mxu0
        %548 = vdwg.mxu0
        %v565 = vunpack.c.l.b16 %v428
        %v566 = vunpack.c.l.b16 %v429
        %v567 = vunpack.c.l.b16 %v430
        %v568 = vunpack.c.l.b16 %v431
        %v569 = vunpack.c.l.b16 %v432
        %v570 = vunpack.c.l.b16 %v433
        %v571 = vunpack.c.l.b16 %v434
        %v572 = vunpack.c.l.b16 %v435
        %v573 = vunpack.c.l.b16 %v436
        %v574 = vunpack.c.l.b16 %v437
        %v575 = vunpack.c.l.b16 %v438
        %v576 = vunpack.c.l.b16 %v439
        %v577 = vunpack.c.l.b16 %v440
        %v578 = vunpack.c.l.b16 %v441
        %v579 = vunpack.c.l.b16 %v442
        %v580 = vunpack.c.l.b16 %v443
        %v581 = vpack.c.b16 %v566, %v565
        %v582 = vpack.c.b16 %v568, %v567
        %v583 = vpack.c.b16 %v570, %v569
        %v584 = vpack.c.b16 %v572, %v571
        %v585 = vpack.c.b16 %v574, %v573
        %v586 = vpack.c.b16 %v576, %v575
        %v587 = vpack.c.b16 %v578, %v577
        %v588 = vpack.c.b16 %v580, %v579
        %597 = vmatprep.subr.bf16.mxu0 0
        %598 = vmatpush1.bf16.msra.mxu0 %v588
        %599 = vmatprep.subr.bf16.mxu0 0
        %600 = vmatpush1.bf16.msra.mxu0 %v587
        %601 = vmatprep.subr.bf16.mxu0 0
        %602 = vmatpush1.bf16.msra.mxu0 %v586
        %603 = vmatprep.subr.bf16.mxu0 0
        %604 = vmatpush1.bf16.msra.mxu0 %v585
        %605 = vmatprep.subr.bf16.mxu0 0
        %606 = vmatpush1.bf16.msra.mxu0 %v584
        %607 = vmatprep.subr.bf16.mxu0 0
        %608 = vmatpush1.bf16.msra.mxu0 %v583
        %609 = vmatprep.subr.bf16.mxu0 0
        %610 = vmatpush1.bf16.msra.mxu0 %v582
        %611 = vmatprep.subr.bf16.mxu0 0
        %612 = vmatpush1.bf16.msra.mxu0 %v581
        %613 = vmatprep.subr.bf16.mxu0 0
        %614 = vmatpush2.bf16.msra.mxu0 0
        %615 = vmatprep.subr.bf16.mxu0 0
        %616 = vmatpush2.bf16.msra.mxu0 0
        %617 = vmatprep.subr.bf16.mxu0 0
        %618 = vmatpush2.bf16.msra.mxu0 0
        %619 = vmatprep.subr.bf16.mxu0 0
        %620 = vmatpush2.bf16.msra.mxu0 0
        %621 = vmatprep.subr.bf16.mxu0 0
        %622 = vmatpush2.bf16.msra.mxu0 0
        %623 = vmatprep.subr.bf16.mxu0 0
        %624 = vmatpush2.bf16.msra.mxu0 0
        %625 = vmatprep.subr.bf16.mxu0 0
        %626 = vmatpush2.bf16.msra.mxu0 0
        %627 = vmatprep.subr.bf16.mxu0 0
        %628 = vmatpush2.bf16.msra.mxu0 0
        %629 = vmatprep.mubr.bf16.mxu0 0
        %630 = vmatmul.mubr.bf16.gmra.mxu0 %v427
        %v631 = vpop.f32.mrf.mxu0
        %v632 = vadd.f32 %v544, %v631
        %v633 = vpop.f32.mrf.mxu0
        %v634 = vpop.f32.mrf.mxu0
        %v635 = vpop.f32.mrf.mxu0
        %636 = vdwg.mxu0
        %v637 = vld [vmem:[%s4] sm:$0x1]
        %v639 = vlaneseq
        %v640 = vshrl.u32 %v639, 7
        %v641 = vsub.s32 0, %v640
        %v642 = vrot.slane %v637, %v641
        %v644 = vadd.f32 %v632, %v642
        %v645 = vtanh.pop %v644
        %646 = vst [vmem:[#allocation3] sm:$0xff] %v645
        %s647 = scalar_lea.vmem %s412, 8 [#allocation14]
        %648 = vst [vmem:[%s647] sm:$0xff] %v645
        %s649 = scalar_lea.vmem %s359, 4 [#allocation4]
        %v650 = vld [vmem:[%s649] sm:$0xf]
        %v651 = vld [vmem:[#allocation9] sm:$0xf]
        %v652 = vld [vmem:[#allocation9 + $0x4] sm:$0xf]
        %v653 = vld [vmem:[#allocation9 + $0x8] sm:$0xf]
        %v654 = vld [vmem:[#allocation9 + $0xc] sm:$0xf]
        %v655 = vld [vmem:[#allocation9 + $0x10] sm:$0xf]
        %v656 = vld [vmem:[#allocation9 + $0x14] sm:$0xf]
        %v657 = vld [vmem:[#allocation9 + $0x18] sm:$0xf]
        %v658 = vld [vmem:[#allocation9 + $0x1c] sm:$0xf]
        %v659 = vld [vmem:[#allocation9 + $0x20] sm:$0xf]
        %v660 = vld [vmem:[#allocation9 + $0x24] sm:$0xf]
        %v661 = vld [vmem:[#allocation9 + $0x28] sm:$0xf]
        %v662 = vld [vmem:[#allocation9 + $0x2c] sm:$0xf]
        %v663 = vld [vmem:[#allocation9 + $0x30] sm:$0xf]
        %v664 = vld [vmem:[#allocation9 + $0x34] sm:$0xf]
        %v665 = vld [vmem:[#allocation9 + $0x38] sm:$0xf]
        %v666 = vld [vmem:[#allocation9 + $0x3c] sm:$0xf]
        %v667 = vpack.c.bf16 %v645, %v645
        %v668 = vld [vmem:[#allocation10] sm:$0xf]
        %v669 = vld [vmem:[#allocation10 + $0x4] sm:$0xf]
        %v670 = vld [vmem:[#allocation10 + $0x8] sm:$0xf]
        %v671 = vld [vmem:[#allocation10 + $0xc] sm:$0xf]
        %v672 = vld [vmem:[#allocation10 + $0x10] sm:$0xf]
        %v673 = vld [vmem:[#allocation10 + $0x14] sm:$0xf]
        %v674 = vld [vmem:[#allocation10 + $0x18] sm:$0xf]
        %v675 = vld [vmem:[#allocation10 + $0x1c] sm:$0xf]
        %v676 = vld [vmem:[#allocation10 + $0x20] sm:$0xf]
        %v677 = vld [vmem:[#allocation10 + $0x24] sm:$0xf]
        %v678 = vld [vmem:[#allocation10 + $0x28] sm:$0xf]
        %v679 = vld [vmem:[#allocation10 + $0x2c] sm:$0xf]
        %v680 = vld [vmem:[#allocation10 + $0x30] sm:$0xf]
        %v681 = vld [vmem:[#allocation10 + $0x34] sm:$0xf]
        %v682 = vld [vmem:[#allocation10 + $0x38] sm:$0xf]
        %v683 = vld [vmem:[#allocation10 + $0x3c] sm:$0xf]
        %v700 = vunpack.c.l.b16 %v668
        %v701 = vunpack.c.l.b16 %v669
        %v702 = vunpack.c.l.b16 %v670
        %v703 = vunpack.c.l.b16 %v671
        %v704 = vunpack.c.l.b16 %v672
        %v705 = vunpack.c.l.b16 %v673
        %v706 = vunpack.c.l.b16 %v674
        %v707 = vunpack.c.l.b16 %v675
        %v708 = vunpack.c.l.b16 %v676
        %v709 = vunpack.c.l.b16 %v677
        %v710 = vunpack.c.l.b16 %v678
        %v711 = vunpack.c.l.b16 %v679
        %v712 = vunpack.c.l.b16 %v680
        %v713 = vunpack.c.l.b16 %v681
        %v714 = vunpack.c.l.b16 %v682
        %v715 = vunpack.c.l.b16 %v683
        %v716 = vpack.c.b16 %v701, %v700
        %v717 = vpack.c.b16 %v703, %v702
        %v718 = vpack.c.b16 %v705, %v704
        %v719 = vpack.c.b16 %v707, %v706
        %v720 = vpack.c.b16 %v709, %v708
        %v721 = vpack.c.b16 %v711, %v710
        %v722 = vpack.c.b16 %v713, %v712
        %v723 = vpack.c.b16 %v715, %v714
        %732 = vmatprep.subr.bf16.mxu0 0
        %733 = vmatpush1.bf16.msra.mxu0 %v723
        %734 = vmatprep.subr.bf16.mxu0 0
        %735 = vmatpush1.bf16.msra.mxu0 %v722
        %736 = vmatprep.subr.bf16.mxu0 0
        %737 = vmatpush1.bf16.msra.mxu0 %v721
        %738 = vmatprep.subr.bf16.mxu0 0
        %739 = vmatpush1.bf16.msra.mxu0 %v720
        %740 = vmatprep.subr.bf16.mxu0 0
        %741 = vmatpush1.bf16.msra.mxu0 %v719
        %742 = vmatprep.subr.bf16.mxu0 0
        %743 = vmatpush1.bf16.msra.mxu0 %v718
        %744 = vmatprep.subr.bf16.mxu0 0
        %745 = vmatpush1.bf16.msra.mxu0 %v717
        %746 = vmatprep.subr.bf16.mxu0 0
        %747 = vmatpush1.bf16.msra.mxu0 %v716
        %748 = vmatprep.subr.bf16.mxu0 0
        %749 = vmatpush2.bf16.msra.mxu0 0
        %750 = vmatprep.subr.bf16.mxu0 0
        %751 = vmatpush2.bf16.msra.mxu0 0
        %752 = vmatprep.subr.bf16.mxu0 0
        %753 = vmatpush2.bf16.msra.mxu0 0
        %754 = vmatprep.subr.bf16.mxu0 0
        %755 = vmatpush2.bf16.msra.mxu0 0
        %756 = vmatprep.subr.bf16.mxu0 0
        %757 = vmatpush2.bf16.msra.mxu0 0
        %758 = vmatprep.subr.bf16.mxu0 0
        %759 = vmatpush2.bf16.msra.mxu0 0
        %760 = vmatprep.subr.bf16.mxu0 0
        %761 = vmatpush2.bf16.msra.mxu0 0
        %762 = vmatprep.subr.bf16.mxu0 0
        %763 = vmatpush2.bf16.msra.mxu0 0
        %764 = vmatprep.mubr.bf16.mxu0 0
        %765 = vmatmul.mubr.bf16.gmra.mxu0 %v667
        %v766 = vpop.f32.mrf.mxu0
        %v767 = vadd.f32 0.0, %v766
        %v768 = vpop.f32.mrf.mxu0
        %v769 = vpop.f32.mrf.mxu0
        %v770 = vpop.f32.mrf.mxu0
        %771 = vdwg.mxu0
        %v788 = vunpack.c.l.b16 %v651
        %v789 = vunpack.c.l.b16 %v652
        %v790 = vunpack.c.l.b16 %v653
        %v791 = vunpack.c.l.b16 %v654
        %v792 = vunpack.c.l.b16 %v655
        %v793 = vunpack.c.l.b16 %v656
        %v794 = vunpack.c.l.b16 %v657
        %v795 = vunpack.c.l.b16 %v658
        %v796 = vunpack.c.l.b16 %v659
        %v797 = vunpack.c.l.b16 %v660
        %v798 = vunpack.c.l.b16 %v661
        %v799 = vunpack.c.l.b16 %v662
        %v800 = vunpack.c.l.b16 %v663
        %v801 = vunpack.c.l.b16 %v664
        %v802 = vunpack.c.l.b16 %v665
        %v803 = vunpack.c.l.b16 %v666
        %v804 = vpack.c.b16 %v789, %v788
        %v805 = vpack.c.b16 %v791, %v790
        %v806 = vpack.c.b16 %v793, %v792
        %v807 = vpack.c.b16 %v795, %v794
        %v808 = vpack.c.b16 %v797, %v796
        %v809 = vpack.c.b16 %v799, %v798
        %v810 = vpack.c.b16 %v801, %v800
        %v811 = vpack.c.b16 %v803, %v802
        %820 = vmatprep.subr.bf16.mxu0 0
        %821 = vmatpush1.bf16.msra.mxu0 %v811
        %822 = vmatprep.subr.bf16.mxu0 0
        %823 = vmatpush1.bf16.msra.mxu0 %v810
        %824 = vmatprep.subr.bf16.mxu0 0
        %825 = vmatpush1.bf16.msra.mxu0 %v809
        %826 = vmatprep.subr.bf16.mxu0 0
        %827 = vmatpush1.bf16.msra.mxu0 %v808
        %828 = vmatprep.subr.bf16.mxu0 0
        %829 = vmatpush1.bf16.msra.mxu0 %v807
        %830 = vmatprep.subr.bf16.mxu0 0
        %831 = vmatpush1.bf16.msra.mxu0 %v806
        %832 = vmatprep.subr.bf16.mxu0 0
        %833 = vmatpush1.bf16.msra.mxu0 %v805
        %834 = vmatprep.subr.bf16.mxu0 0
        %835 = vmatpush1.bf16.msra.mxu0 %v804
        %836 = vmatprep.subr.bf16.mxu0 0
        %837 = vmatpush2.bf16.msra.mxu0 0
        %838 = vmatprep.subr.bf16.mxu0 0
        %839 = vmatpush2.bf16.msra.mxu0 0
        %840 = vmatprep.subr.bf16.mxu0 0
        %841 = vmatpush2.bf16.msra.mxu0 0
        %842 = vmatprep.subr.bf16.mxu0 0
        %843 = vmatpush2.bf16.msra.mxu0 0
        %844 = vmatprep.subr.bf16.mxu0 0
        %845 = vmatpush2.bf16.msra.mxu0 0
        %846 = vmatprep.subr.bf16.mxu0 0
        %847 = vmatpush2.bf16.msra.mxu0 0
        %848 = vmatprep.subr.bf16.mxu0 0
        %849 = vmatpush2.bf16.msra.mxu0 0
        %850 = vmatprep.subr.bf16.mxu0 0
        %851 = vmatpush2.bf16.msra.mxu0 0
        %852 = vmatprep.mubr.bf16.mxu0 0
        %853 = vmatmul.mubr.bf16.gmra.mxu0 %v650
        %v854 = vpop.f32.mrf.mxu0
        %v855 = vadd.f32 %v767, %v854
        %v856 = vpop.f32.mrf.mxu0
        %v857 = vpop.f32.mrf.mxu0
        %v858 = vpop.f32.mrf.mxu0
        %859 = vdwg.mxu0
        %v860 = vld [vmem:[%s4] sm:$0x1]
        %v862 = vlaneseq
        %v863 = vshrl.u32 %v862, 7
        %v864 = vsub.s32 0, %v863
        %v865 = vrot.slane %v860, %v864
        %v867 = vadd.f32 %v855, %v865
        %v868 = vtanh.pop %v867
        %s869 = scalar_lea.vmem [#allocation3], 8
        %870 = vst [vmem:[%s869] sm:$0xff] %v868
        %s871 = scalar_lea.vmem %s412, 16 [#allocation14]
        %872 = vst [vmem:[%s871] sm:$0xff] %v868
        %s873 = scalar_lea.vmem %s359, 8 [#allocation4]
        %v874 = vld [vmem:[%s873] sm:$0xf]
        %v875 = vld [vmem:[#allocation9] sm:$0xf]
        %v876 = vld [vmem:[#allocation9 + $0x4] sm:$0xf]
        %v877 = vld [vmem:[#allocation9 + $0x8] sm:$0xf]
        %v878 = vld [vmem:[#allocation9 + $0xc] sm:$0xf]
        %v879 = vld [vmem:[#allocation9 + $0x10] sm:$0xf]
        %v880 = vld [vmem:[#allocation9 + $0x14] sm:$0xf]
        %v881 = vld [vmem:[#allocation9 + $0x18] sm:$0xf]
        %v882 = vld [vmem:[#allocation9 + $0x1c] sm:$0xf]
        %v883 = vld [vmem:[#allocation9 + $0x20] sm:$0xf]
        %v884 = vld [vmem:[#allocation9 + $0x24] sm:$0xf]
        %v885 = vld [vmem:[#allocation9 + $0x28] sm:$0xf]
        %v886 = vld [vmem:[#allocation9 + $0x2c] sm:$0xf]
        %v887 = vld [vmem:[#allocation9 + $0x30] sm:$0xf]
        %v888 = vld [vmem:[#allocation9 + $0x34] sm:$0xf]
        %v889 = vld [vmem:[#allocation9 + $0x38] sm:$0xf]
        %v890 = vld [vmem:[#allocation9 + $0x3c] sm:$0xf]
        %v891 = vpack.c.bf16 %v868, %v868
        %v892 = vld [vmem:[#allocation10] sm:$0xf]
        %v893 = vld [vmem:[#allocation10 + $0x4] sm:$0xf]
        %v894 = vld [vmem:[#allocation10 + $0x8] sm:$0xf]
        %v895 = vld [vmem:[#allocation10 + $0xc] sm:$0xf]
        %v896 = vld [vmem:[#allocation10 + $0x10] sm:$0xf]
        %v897 = vld [vmem:[#allocation10 + $0x14] sm:$0xf]
        %v898 = vld [vmem:[#allocation10 + $0x18] sm:$0xf]
        %v899 = vld [vmem:[#allocation10 + $0x1c] sm:$0xf]
        %v900 = vld [vmem:[#allocation10 + $0x20] sm:$0xf]
        %v901 = vld [vmem:[#allocation10 + $0x24] sm:$0xf]
        %v902 = vld [vmem:[#allocation10 + $0x28] sm:$0xf]
        %v903 = vld [vmem:[#allocation10 + $0x2c] sm:$0xf]
        %v904 = vld [vmem:[#allocation10 + $0x30] sm:$0xf]
        %v905 = vld [vmem:[#allocation10 + $0x34] sm:$0xf]
        %v906 = vld [vmem:[#allocation10 + $0x38] sm:$0xf]
        %v907 = vld [vmem:[#allocation10 + $0x3c] sm:$0xf]
        %v924 = vunpack.c.l.b16 %v892
        %v925 = vunpack.c.l.b16 %v893
        %v926 = vunpack.c.l.b16 %v894
        %v927 = vunpack.c.l.b16 %v895
        %v928 = vunpack.c.l.b16 %v896
        %v929 = vunpack.c.l.b16 %v897
        %v930 = vunpack.c.l.b16 %v898
        %v931 = vunpack.c.l.b16 %v899
        %v932 = vunpack.c.l.b16 %v900
        %v933 = vunpack.c.l.b16 %v901
        %v934 = vunpack.c.l.b16 %v902
        %v935 = vunpack.c.l.b16 %v903
        %v936 = vunpack.c.l.b16 %v904
        %v937 = vunpack.c.l.b16 %v905
        %v938 = vunpack.c.l.b16 %v906
        %v939 = vunpack.c.l.b16 %v907
        %v940 = vpack.c.b16 %v925, %v924
        %v941 = vpack.c.b16 %v927, %v926
        %v942 = vpack.c.b16 %v929, %v928
        %v943 = vpack.c.b16 %v931, %v930
        %v944 = vpack.c.b16 %v933, %v932
        %v945 = vpack.c.b16 %v935, %v934
        %v946 = vpack.c.b16 %v937, %v936
        %v947 = vpack.c.b16 %v939, %v938
        %956 = vmatprep.subr.bf16.mxu0 0
        %957 = vmatpush1.bf16.msra.mxu0 %v947
        %958 = vmatprep.subr.bf16.mxu0 0
        %959 = vmatpush1.bf16.msra.mxu0 %v946
        %960 = vmatprep.subr.bf16.mxu0 0
        %961 = vmatpush1.bf16.msra.mxu0 %v945
        %962 = vmatprep.subr.bf16.mxu0 0
        %963 = vmatpush1.bf16.msra.mxu0 %v944
        %964 = vmatprep.subr.bf16.mxu0 0
        %965 = vmatpush1.bf16.msra.mxu0 %v943
        %966 = vmatprep.subr.bf16.mxu0 0
        %967 = vmatpush1.bf16.msra.mxu0 %v942
        %968 = vmatprep.subr.bf16.mxu0 0
        %969 = vmatpush1.bf16.msra.mxu0 %v941
        %970 = vmatprep.subr.bf16.mxu0 0
        %971 = vmatpush1.bf16.msra.mxu0 %v940
        %972 = vmatprep.subr.bf16.mxu0 0
        %973 = vmatpush2.bf16.msra.mxu0 0
        %974 = vmatprep.subr.bf16.mxu0 0
        %975 = vmatpush2.bf16.msra.mxu0 0
        %976 = vmatprep.subr.bf16.mxu0 0
        %977 = vmatpush2.bf16.msra.mxu0 0
        %978 = vmatprep.subr.bf16.mxu0 0
        %979 = vmatpush2.bf16.msra.mxu0 0
        %980 = vmatprep.subr.bf16.mxu0 0
        %981 = vmatpush2.bf16.msra.mxu0 0
        %982 = vmatprep.subr.bf16.mxu0 0
        %983 = vmatpush2.bf16.msra.mxu0 0
        %984 = vmatprep.subr.bf16.mxu0 0
        %985 = vmatpush2.bf16.msra.mxu0 0
        %986 = vmatprep.subr.bf16.mxu0 0
        %987 = vmatpush2.bf16.msra.mxu0 0
        %988 = vmatprep.mubr.bf16.mxu0 0
        %989 = vmatmul.mubr.bf16.gmra.mxu0 %v891
        %v990 = vpop.f32.mrf.mxu0
        %v991 = vadd.f32 0.0, %v990
        %v992 = vpop.f32.mrf.mxu0
        %v993 = vpop.f32.mrf.mxu0
        %v994 = vpop.f32.mrf.mxu0
        %995 = vdwg.mxu0
        %v1012 = vunpack.c.l.b16 %v875
        %v1013 = vunpack.c.l.b16 %v876
        %v1014 = vunpack.c.l.b16 %v877
        %v1015 = vunpack.c.l.b16 %v878
        %v1016 = vunpack.c.l.b16 %v879
        %v1017 = vunpack.c.l.b16 %v880
        %v1018 = vunpack.c.l.b16 %v881
        %v1019 = vunpack.c.l.b16 %v882
        %v1020 = vunpack.c.l.b16 %v883
        %v1021 = vunpack.c.l.b16 %v884
        %v1022 = vunpack.c.l.b16 %v885
        %v1023 = vunpack.c.l.b16 %v886
        %v1024 = vunpack.c.l.b16 %v887
        %v1025 = vunpack.c.l.b16 %v888
        %v1026 = vunpack.c.l.b16 %v889
        %v1027 = vunpack.c.l.b16 %v890
        %v1028 = vpack.c.b16 %v1013, %v1012
        %v1029 = vpack.c.b16 %v1015, %v1014
        %v1030 = vpack.c.b16 %v1017, %v1016
        %v1031 = vpack.c.b16 %v1019, %v1018
        %v1032 = vpack.c.b16 %v1021, %v1020
        %v1033 = vpack.c.b16 %v1023, %v1022
        %v1034 = vpack.c.b16 %v1025, %v1024
        %v1035 = vpack.c.b16 %v1027, %v1026
        %1044 = vmatprep.subr.bf16.mxu0 0
        %1045 = vmatpush1.bf16.msra.mxu0 %v1035
        %1046 = vmatprep.subr.bf16.mxu0 0
        %1047 = vmatpush1.bf16.msra.mxu0 %v1034
        %1048 = vmatprep.subr.bf16.mxu0 0
        %1049 = vmatpush1.bf16.msra.mxu0 %v1033
        %1050 = vmatprep.subr.bf16.mxu0 0
        %1051 = vmatpush1.bf16.msra.mxu0 %v1032
        %1052 = vmatprep.subr.bf16.mxu0 0
        %1053 = vmatpush1.bf16.msra.mxu0 %v1031
        %1054 = vmatprep.subr.bf16.mxu0 0
        %1055 = vmatpush1.bf16.msra.mxu0 %v1030
        %1056 = vmatprep.subr.bf16.mxu0 0
        %1057 = vmatpush1.bf16.msra.mxu0 %v1029
        %1058 = vmatprep.subr.bf16.mxu0 0
        %1059 = vmatpush1.bf16.msra.mxu0 %v1028
        %1060 = vmatprep.subr.bf16.mxu0 0
        %1061 = vmatpush2.bf16.msra.mxu0 0
        %1062 = vmatprep.subr.bf16.mxu0 0
        %1063 = vmatpush2.bf16.msra.mxu0 0
        %1064 = vmatprep.subr.bf16.mxu0 0
        %1065 = vmatpush2.bf16.msra.mxu0 0
        %1066 = vmatprep.subr.bf16.mxu0 0
        %1067 = vmatpush2.bf16.msra.mxu0 0
        %1068 = vmatprep.subr.bf16.mxu0 0
        %1069 = vmatpush2.bf16.msra.mxu0 0
        %1070 = vmatprep.subr.bf16.mxu0 0
        %1071 = vmatpush2.bf16.msra.mxu0 0
        %1072 = vmatprep.subr.bf16.mxu0 0
        %1073 = vmatpush2.bf16.msra.mxu0 0
        %1074 = vmatprep.subr.bf16.mxu0 0
        %1075 = vmatpush2.bf16.msra.mxu0 0
        %1076 = vmatprep.mubr.bf16.mxu0 0
        %1077 = vmatmul.mubr.bf16.gmra.mxu0 %v874
        %v1078 = vpop.f32.mrf.mxu0
        %v1079 = vadd.f32 %v991, %v1078
        %v1080 = vpop.f32.mrf.mxu0
        %v1081 = vpop.f32.mrf.mxu0
        %v1082 = vpop.f32.mrf.mxu0
        %1083 = vdwg.mxu0
        %v1084 = vld [vmem:[%s4] sm:$0x1]
        %v1086 = vlaneseq
        %v1087 = vshrl.u32 %v1086, 7
        %v1088 = vsub.s32 0, %v1087
        %v1089 = vrot.slane %v1084, %v1088
        %v1091 = vadd.f32 %v1079, %v1089
        %v1092 = vtanh.pop %v1091
        %s1093 = scalar_lea.vmem [#allocation3], 16
        %1094 = vst [vmem:[%s1093] sm:$0xff] %v1092
        %s1095 = scalar_lea.vmem %s412, 24 [#allocation14]
        %1096 = vst [vmem:[%s1095] sm:$0xff] %v1092
        %s1097 = scalar_lea.vmem %s359, 12 [#allocation4]
        %v1098 = vld [vmem:[%s1097] sm:$0xf]
        %v1099 = vld [vmem:[#allocation9] sm:$0xf]
        %v1100 = vld [vmem:[#allocation9 + $0x4] sm:$0xf]
        %v1101 = vld [vmem:[#allocation9 + $0x8] sm:$0xf]
        %v1102 = vld [vmem:[#allocation9 + $0xc] sm:$0xf]
        %v1103 = vld [vmem:[#allocation9 + $0x10] sm:$0xf]
        %v1104 = vld [vmem:[#allocation9 + $0x14] sm:$0xf]
        %v1105 = vld [vmem:[#allocation9 + $0x18] sm:$0xf]
        %v1106 = vld [vmem:[#allocation9 + $0x1c] sm:$0xf]
        %v1107 = vld [vmem:[#allocation9 + $0x20] sm:$0xf]
        %v1108 = vld [vmem:[#allocation9 + $0x24] sm:$0xf]
        %v1109 = vld [vmem:[#allocation9 + $0x28] sm:$0xf]
        %v1110 = vld [vmem:[#allocation9 + $0x2c] sm:$0xf]
        %v1111 = vld [vmem:[#allocation9 + $0x30] sm:$0xf]
        %v1112 = vld [vmem:[#allocation9 + $0x34] sm:$0xf]
        %v1113 = vld [vmem:[#allocation9 + $0x38] sm:$0xf]
        %v1114 = vld [vmem:[#allocation9 + $0x3c] sm:$0xf]
        %v1115 = vpack.c.bf16 %v1092, %v1092
        %v1116 = vld [vmem:[#allocation10] sm:$0xf]
        %v1117 = vld [vmem:[#allocation10 + $0x4] sm:$0xf]
        %v1118 = vld [vmem:[#allocation10 + $0x8] sm:$0xf]
        %v1119 = vld [vmem:[#allocation10 + $0xc] sm:$0xf]
        %v1120 = vld [vmem:[#allocation10 + $0x10] sm:$0xf]
        %v1121 = vld [vmem:[#allocation10 + $0x14] sm:$0xf]
        %v1122 = vld [vmem:[#allocation10 + $0x18] sm:$0xf]
        %v1123 = vld [vmem:[#allocation10 + $0x1c] sm:$0xf]
        %v1124 = vld [vmem:[#allocation10 + $0x20] sm:$0xf]
        %v1125 = vld [vmem:[#allocation10 + $0x24] sm:$0xf]
        %v1126 = vld [vmem:[#allocation10 + $0x28] sm:$0xf]
        %v1127 = vld [vmem:[#allocation10 + $0x2c] sm:$0xf]
        %v1128 = vld [vmem:[#allocation10 + $0x30] sm:$0xf]
        %v1129 = vld [vmem:[#allocation10 + $0x34] sm:$0xf]
        %v1130 = vld [vmem:[#allocation10 + $0x38] sm:$0xf]
        %v1131 = vld [vmem:[#allocation10 + $0x3c] sm:$0xf]
        %v1148 = vunpack.c.l.b16 %v1116
        %v1149 = vunpack.c.l.b16 %v1117
        %v1150 = vunpack.c.l.b16 %v1118
        %v1151 = vunpack.c.l.b16 %v1119
        %v1152 = vunpack.c.l.b16 %v1120
        %v1153 = vunpack.c.l.b16 %v1121
        %v1154 = vunpack.c.l.b16 %v1122
        %v1155 = vunpack.c.l.b16 %v1123
        %v1156 = vunpack.c.l.b16 %v1124
        %v1157 = vunpack.c.l.b16 %v1125
        %v1158 = vunpack.c.l.b16 %v1126
        %v1159 = vunpack.c.l.b16 %v1127
        %v1160 = vunpack.c.l.b16 %v1128
        %v1161 = vunpack.c.l.b16 %v1129
        %v1162 = vunpack.c.l.b16 %v1130
        %v1163 = vunpack.c.l.b16 %v1131
        %v1164 = vpack.c.b16 %v1149, %v1148
        %v1165 = vpack.c.b16 %v1151, %v1150
        %v1166 = vpack.c.b16 %v1153, %v1152
        %v1167 = vpack.c.b16 %v1155, %v1154
        %v1168 = vpack.c.b16 %v1157, %v1156
        %v1169 = vpack.c.b16 %v1159, %v1158
        %v1170 = vpack.c.b16 %v1161, %v1160
        %v1171 = vpack.c.b16 %v1163, %v1162
        %1180 = vmatprep.subr.bf16.mxu0 0
        %1181 = vmatpush1.bf16.msra.mxu0 %v1171
        %1182 = vmatprep.subr.bf16.mxu0 0
        %1183 = vmatpush1.bf16.msra.mxu0 %v1170
        %1184 = vmatprep.subr.bf16.mxu0 0
        %1185 = vmatpush1.bf16.msra.mxu0 %v1169
        %1186 = vmatprep.subr.bf16.mxu0 0
        %1187 = vmatpush1.bf16.msra.mxu0 %v1168
        %1188 = vmatprep.subr.bf16.mxu0 0
        %1189 = vmatpush1.bf16.msra.mxu0 %v1167
        %1190 = vmatprep.subr.bf16.mxu0 0
        %1191 = vmatpush1.bf16.msra.mxu0 %v1166
        %1192 = vmatprep.subr.bf16.mxu0 0
        %1193 = vmatpush1.bf16.msra.mxu0 %v1165
        %1194 = vmatprep.subr.bf16.mxu0 0
        %1195 = vmatpush1.bf16.msra.mxu0 %v1164
        %1196 = vmatprep.subr.bf16.mxu0 0
        %1197 = vmatpush2.bf16.msra.mxu0 0
        %1198 = vmatprep.subr.bf16.mxu0 0
        %1199 = vmatpush2.bf16.msra.mxu0 0
        %1200 = vmatprep.subr.bf16.mxu0 0
        %1201 = vmatpush2.bf16.msra.mxu0 0
        %1202 = vmatprep.subr.bf16.mxu0 0
        %1203 = vmatpush2.bf16.msra.mxu0 0
        %1204 = vmatprep.subr.bf16.mxu0 0
        %1205 = vmatpush2.bf16.msra.mxu0 0
        %1206 = vmatprep.subr.bf16.mxu0 0
        %1207 = vmatpush2.bf16.msra.mxu0 0
        %1208 = vmatprep.subr.bf16.mxu0 0
        %1209 = vmatpush2.bf16.msra.mxu0 0
        %1210 = vmatprep.subr.bf16.mxu0 0
        %1211 = vmatpush2.bf16.msra.mxu0 0
        %1212 = vmatprep.mubr.bf16.mxu0 0
        %1213 = vmatmul.mubr.bf16.gmra.mxu0 %v1115
        %v1214 = vpop.f32.mrf.mxu0
        %v1215 = vadd.f32 0.0, %v1214
        %v1216 = vpop.f32.mrf.mxu0
        %v1217 = vpop.f32.mrf.mxu0
        %v1218 = vpop.f32.mrf.mxu0
        %1219 = vdwg.mxu0
        %v1236 = vunpack.c.l.b16 %v1099
        %v1237 = vunpack.c.l.b16 %v1100
        %v1238 = vunpack.c.l.b16 %v1101
        %v1239 = vunpack.c.l.b16 %v1102
        %v1240 = vunpack.c.l.b16 %v1103
        %v1241 = vunpack.c.l.b16 %v1104
        %v1242 = vunpack.c.l.b16 %v1105
        %v1243 = vunpack.c.l.b16 %v1106
        %v1244 = vunpack.c.l.b16 %v1107
        %v1245 = vunpack.c.l.b16 %v1108
        %v1246 = vunpack.c.l.b16 %v1109
        %v1247 = vunpack.c.l.b16 %v1110
        %v1248 = vunpack.c.l.b16 %v1111
        %v1249 = vunpack.c.l.b16 %v1112
        %v1250 = vunpack.c.l.b16 %v1113
        %v1251 = vunpack.c.l.b16 %v1114
        %v1252 = vpack.c.b16 %v1237, %v1236
        %v1253 = vpack.c.b16 %v1239, %v1238
        %v1254 = vpack.c.b16 %v1241, %v1240
        %v1255 = vpack.c.b16 %v1243, %v1242
        %v1256 = vpack.c.b16 %v1245, %v1244
        %v1257 = vpack.c.b16 %v1247, %v1246
        %v1258 = vpack.c.b16 %v1249, %v1248
        %v1259 = vpack.c.b16 %v1251, %v1250
        %1268 = vmatprep.subr.bf16.mxu0 0
        %1269 = vmatpush1.bf16.msra.mxu0 %v1259
        %1270 = vmatprep.subr.bf16.mxu0 0
        %1271 = vmatpush1.bf16.msra.mxu0 %v1258
        %1272 = vmatprep.subr.bf16.mxu0 0
        %1273 = vmatpush1.bf16.msra.mxu0 %v1257
        %1274 = vmatprep.subr.bf16.mxu0 0
        %1275 = vmatpush1.bf16.msra.mxu0 %v1256
        %1276 = vmatprep.subr.bf16.mxu0 0
        %1277 = vmatpush1.bf16.msra.mxu0 %v1255
        %1278 = vmatprep.subr.bf16.mxu0 0
        %1279 = vmatpush1.bf16.msra.mxu0 %v1254
        %1280 = vmatprep.subr.bf16.mxu0 0
        %1281 = vmatpush1.bf16.msra.mxu0 %v1253
        %1282 = vmatprep.subr.bf16.mxu0 0
        %1283 = vmatpush1.bf16.msra.mxu0 %v1252
        %1284 = vmatprep.subr.bf16.mxu0 0
        %1285 = vmatpush2.bf16.msra.mxu0 0
        %1286 = vmatprep.subr.bf16.mxu0 0
        %1287 = vmatpush2.bf16.msra.mxu0 0
        %1288 = vmatprep.subr.bf16.mxu0 0
        %1289 = vmatpush2.bf16.msra.mxu0 0
        %1290 = vmatprep.subr.bf16.mxu0 0
        %1291 = vmatpush2.bf16.msra.mxu0 0
        %1292 = vmatprep.subr.bf16.mxu0 0
        %1293 = vmatpush2.bf16.msra.mxu0 0
        %1294 = vmatprep.subr.bf16.mxu0 0
        %1295 = vmatpush2.bf16.msra.mxu0 0
        %1296 = vmatprep.subr.bf16.mxu0 0
        %1297 = vmatpush2.bf16.msra.mxu0 0
        %1298 = vmatprep.subr.bf16.mxu0 0
        %1299 = vmatpush2.bf16.msra.mxu0 0
        %1300 = vmatprep.mubr.bf16.mxu0 0
        %1301 = vmatmul.mubr.bf16.gmra.mxu0 %v1098
        %v1302 = vpop.f32.mrf.mxu0
        %v1303 = vadd.f32 %v1215, %v1302
        %v1304 = vpop.f32.mrf.mxu0
        %v1305 = vpop.f32.mrf.mxu0
        %v1306 = vpop.f32.mrf.mxu0
        %1307 = vdwg.mxu0
        %v1308 = vld [vmem:[%s4] sm:$0x1]
        %v1310 = vlaneseq
        %v1311 = vshrl.u32 %v1310, 7
        %v1312 = vsub.s32 0, %v1311
        %v1313 = vrot.slane %v1308, %v1312
        %v1315 = vadd.f32 %v1303, %v1313
        %v1316 = vtanh.pop %v1315
        %s1317 = scalar_lea.vmem [#allocation3], 24
        %1318 = vst [vmem:[%s1317] sm:$0xff] %v1316
        %s1319 = scalar_lea.vmem %s412, 32 [#allocation14]
        %1320 = vst [vmem:[%s1319] sm:$0xff] %v1316
        %s1321 = scalar_lea.vmem %s359, 16 [#allocation4]
        %v1322 = vld [vmem:[%s1321] sm:$0xf]
        %v1323 = vld [vmem:[#allocation9] sm:$0xf]
        %v1324 = vld [vmem:[#allocation9 + $0x4] sm:$0xf]
        %v1325 = vld [vmem:[#allocation9 + $0x8] sm:$0xf]
        %v1326 = vld [vmem:[#allocation9 + $0xc] sm:$0xf]
        %v1327 = vld [vmem:[#allocation9 + $0x10] sm:$0xf]
        %v1328 = vld [vmem:[#allocation9 + $0x14] sm:$0xf]
        %v1329 = vld [vmem:[#allocation9 + $0x18] sm:$0xf]
        %v1330 = vld [vmem:[#allocation9 + $0x1c] sm:$0xf]
        %v1331 = vld [vmem:[#allocation9 + $0x20] sm:$0xf]
        %v1332 = vld [vmem:[#allocation9 + $0x24] sm:$0xf]
        %v1333 = vld [vmem:[#allocation9 + $0x28] sm:$0xf]
        %v1334 = vld [vmem:[#allocation9 + $0x2c] sm:$0xf]
        %v1335 = vld [vmem:[#allocation9 + $0x30] sm:$0xf]
        %v1336 = vld [vmem:[#allocation9 + $0x34] sm:$0xf]
        %v1337 = vld [vmem:[#allocation9 + $0x38] sm:$0xf]
        %v1338 = vld [vmem:[#allocation9 + $0x3c] sm:$0xf]
        %v1339 = vpack.c.bf16 %v1316, %v1316
        %v1340 = vld [vmem:[#allocation10] sm:$0xf]
        %v1341 = vld [vmem:[#allocation10 + $0x4] sm:$0xf]
        %v1342 = vld [vmem:[#allocation10 + $0x8] sm:$0xf]
        %v1343 = vld [vmem:[#allocation10 + $0xc] sm:$0xf]
        %v1344 = vld [vmem:[#allocation10 + $0x10] sm:$0xf]
        %v1345 = vld [vmem:[#allocation10 + $0x14] sm:$0xf]
        %v1346 = vld [vmem:[#allocation10 + $0x18] sm:$0xf]
        %v1347 = vld [vmem:[#allocation10 + $0x1c] sm:$0xf]
        %v1348 = vld [vmem:[#allocation10 + $0x20] sm:$0xf]
        %v1349 = vld [vmem:[#allocation10 + $0x24] sm:$0xf]
        %v1350 = vld [vmem:[#allocation10 + $0x28] sm:$0xf]
        %v1351 = vld [vmem:[#allocation10 + $0x2c] sm:$0xf]
        %v1352 = vld [vmem:[#allocation10 + $0x30] sm:$0xf]
        %v1353 = vld [vmem:[#allocation10 + $0x34] sm:$0xf]
        %v1354 = vld [vmem:[#allocation10 + $0x38] sm:$0xf]
        %v1355 = vld [vmem:[#allocation10 + $0x3c] sm:$0xf]
        %v1372 = vunpack.c.l.b16 %v1340
        %v1373 = vunpack.c.l.b16 %v1341
        %v1374 = vunpack.c.l.b16 %v1342
        %v1375 = vunpack.c.l.b16 %v1343
        %v1376 = vunpack.c.l.b16 %v1344
        %v1377 = vunpack.c.l.b16 %v1345
        %v1378 = vunpack.c.l.b16 %v1346
        %v1379 = vunpack.c.l.b16 %v1347
        %v1380 = vunpack.c.l.b16 %v1348
        %v1381 = vunpack.c.l.b16 %v1349
        %v1382 = vunpack.c.l.b16 %v1350
        %v1383 = vunpack.c.l.b16 %v1351
        %v1384 = vunpack.c.l.b16 %v1352
        %v1385 = vunpack.c.l.b16 %v1353
        %v1386 = vunpack.c.l.b16 %v1354
        %v1387 = vunpack.c.l.b16 %v1355
        %v1388 = vpack.c.b16 %v1373, %v1372
        %v1389 = vpack.c.b16 %v1375, %v1374
        %v1390 = vpack.c.b16 %v1377, %v1376
        %v1391 = vpack.c.b16 %v1379, %v1378
        %v1392 = vpack.c.b16 %v1381, %v1380
        %v1393 = vpack.c.b16 %v1383, %v1382
        %v1394 = vpack.c.b16 %v1385, %v1384
        %v1395 = vpack.c.b16 %v1387, %v1386
        %1404 = vmatprep.subr.bf16.mxu0 0
        %1405 = vmatpush1.bf16.msra.mxu0 %v1395
        %1406 = vmatprep.subr.bf16.mxu0 0
        %1407 = vmatpush1.bf16.msra.mxu0 %v1394
        %1408 = vmatprep.subr.bf16.mxu0 0
        %1409 = vmatpush1.bf16.msra.mxu0 %v1393
        %1410 = vmatprep.subr.bf16.mxu0 0
        %1411 = vmatpush1.bf16.msra.mxu0 %v1392
        %1412 = vmatprep.subr.bf16.mxu0 0
        %1413 = vmatpush1.bf16.msra.mxu0 %v1391
        %1414 = vmatprep.subr.bf16.mxu0 0
        %1415 = vmatpush1.bf16.msra.mxu0 %v1390
        %1416 = vmatprep.subr.bf16.mxu0 0
        %1417 = vmatpush1.bf16.msra.mxu0 %v1389
        %1418 = vmatprep.subr.bf16.mxu0 0
        %1419 = vmatpush1.bf16.msra.mxu0 %v1388
        %1420 = vmatprep.subr.bf16.mxu0 0
        %1421 = vmatpush2.bf16.msra.mxu0 0
        %1422 = vmatprep.subr.bf16.mxu0 0
        %1423 = vmatpush2.bf16.msra.mxu0 0
        %1424 = vmatprep.subr.bf16.mxu0 0
        %1425 = vmatpush2.bf16.msra.mxu0 0
        %1426 = vmatprep.subr.bf16.mxu0 0
        %1427 = vmatpush2.bf16.msra.mxu0 0
        %1428 = vmatprep.subr.bf16.mxu0 0
        %1429 = vmatpush2.bf16.msra.mxu0 0
        %1430 = vmatprep.subr.bf16.mxu0 0
        %1431 = vmatpush2.bf16.msra.mxu0 0
        %1432 = vmatprep.subr.bf16.mxu0 0
        %1433 = vmatpush2.bf16.msra.mxu0 0
        %1434 = vmatprep.subr.bf16.mxu0 0
        %1435 = vmatpush2.bf16.msra.mxu0 0
        %1436 = vmatprep.mubr.bf16.mxu0 0
        %1437 = vmatmul.mubr.bf16.gmra.mxu0 %v1339
        %v1438 = vpop.f32.mrf.mxu0
        %v1439 = vadd.f32 0.0, %v1438
        %v1440 = vpop.f32.mrf.mxu0
        %v1441 = vpop.f32.mrf.mxu0
        %v1442 = vpop.f32.mrf.mxu0
        %1443 = vdwg.mxu0
        %v1460 = vunpack.c.l.b16 %v1323
        %v1461 = vunpack.c.l.b16 %v1324
        %v1462 = vunpack.c.l.b16 %v1325
        %v1463 = vunpack.c.l.b16 %v1326
        %v1464 = vunpack.c.l.b16 %v1327
        %v1465 = vunpack.c.l.b16 %v1328
        %v1466 = vunpack.c.l.b16 %v1329
        %v1467 = vunpack.c.l.b16 %v1330
        %v1468 = vunpack.c.l.b16 %v1331
        %v1469 = vunpack.c.l.b16 %v1332
        %v1470 = vunpack.c.l.b16 %v1333
        %v1471 = vunpack.c.l.b16 %v1334
        %v1472 = vunpack.c.l.b16 %v1335
        %v1473 = vunpack.c.l.b16 %v1336
        %v1474 = vunpack.c.l.b16 %v1337
        %v1475 = vunpack.c.l.b16 %v1338
        %v1476 = vpack.c.b16 %v1461, %v1460
        %v1477 = vpack.c.b16 %v1463, %v1462
        %v1478 = vpack.c.b16 %v1465, %v1464
        %v1479 = vpack.c.b16 %v1467, %v1466
        %v1480 = vpack.c.b16 %v1469, %v1468
        %v1481 = vpack.c.b16 %v1471, %v1470
        %v1482 = vpack.c.b16 %v1473, %v1472
        %v1483 = vpack.c.b16 %v1475, %v1474
        %1492 = vmatprep.subr.bf16.mxu0 0
        %1493 = vmatpush1.bf16.msra.mxu0 %v1483
        %1494 = vmatprep.subr.bf16.mxu0 0
        %1495 = vmatpush1.bf16.msra.mxu0 %v1482
        %1496 = vmatprep.subr.bf16.mxu0 0
        %1497 = vmatpush1.bf16.msra.mxu0 %v1481
        %1498 = vmatprep.subr.bf16.mxu0 0
        %1499 = vmatpush1.bf16.msra.mxu0 %v1480
        %1500 = vmatprep.subr.bf16.mxu0 0
        %1501 = vmatpush1.bf16.msra.mxu0 %v1479
        %1502 = vmatprep.subr.bf16.mxu0 0
        %1503 = vmatpush1.bf16.msra.mxu0 %v1478
        %1504 = vmatprep.subr.bf16.mxu0 0
        %1505 = vmatpush1.bf16.msra.mxu0 %v1477
        %1506 = vmatprep.subr.bf16.mxu0 0
        %1507 = vmatpush1.bf16.msra.mxu0 %v1476
        %1508 = vmatprep.subr.bf16.mxu0 0
        %1509 = vmatpush2.bf16.msra.mxu0 0
        %1510 = vmatprep.subr.bf16.mxu0 0
        %1511 = vmatpush2.bf16.msra.mxu0 0
        %1512 = vmatprep.subr.bf16.mxu0 0
        %1513 = vmatpush2.bf16.msra.mxu0 0
        %1514 = vmatprep.subr.bf16.mxu0 0
        %1515 = vmatpush2.bf16.msra.mxu0 0
        %1516 = vmatprep.subr.bf16.mxu0 0
        %1517 = vmatpush2.bf16.msra.mxu0 0
        %1518 = vmatprep.subr.bf16.mxu0 0
        %1519 = vmatpush2.bf16.msra.mxu0 0
        %1520 = vmatprep.subr.bf16.mxu0 0
        %1521 = vmatpush2.bf16.msra.mxu0 0
        %1522 = vmatprep.subr.bf16.mxu0 0
        %1523 = vmatpush2.bf16.msra.mxu0 0
        %1524 = vmatprep.mubr.bf16.mxu0 0
        %1525 = vmatmul.mubr.bf16.gmra.mxu0 %v1322
        %v1526 = vpop.f32.mrf.mxu0
        %v1527 = vadd.f32 %v1439, %v1526
        %v1528 = vpop.f32.mrf.mxu0
        %v1529 = vpop.f32.mrf.mxu0
        %v1530 = vpop.f32.mrf.mxu0
        %1531 = vdwg.mxu0
        %v1532 = vld [vmem:[%s4] sm:$0x1]
        %v1534 = vlaneseq
        %v1535 = vshrl.u32 %v1534, 7
        %v1536 = vsub.s32 0, %v1535
        %v1537 = vrot.slane %v1532, %v1536
        %v1539 = vadd.f32 %v1527, %v1537
        %v1540 = vtanh.pop %v1539
        %s1541 = scalar_lea.vmem [#allocation3], 32
        %1542 = vst [vmem:[%s1541] sm:$0xff] %v1540
        %s1543 = scalar_lea.vmem %s412, 40 [#allocation14]
        %1544 = vst [vmem:[%s1543] sm:$0xff] %v1540
        %s1545 = scalar_lea.vmem %s359, 20 [#allocation4]
        %v1546 = vld [vmem:[%s1545] sm:$0xf]
        %v1547 = vld [vmem:[#allocation9] sm:$0xf]
        %v1548 = vld [vmem:[#allocation9 + $0x4] sm:$0xf]
        %v1549 = vld [vmem:[#allocation9 + $0x8] sm:$0xf]
        %v1550 = vld [vmem:[#allocation9 + $0xc] sm:$0xf]
        %v1551 = vld [vmem:[#allocation9 + $0x10] sm:$0xf]
        %v1552 = vld [vmem:[#allocation9 + $0x14] sm:$0xf]
        %v1553 = vld [vmem:[#allocation9 + $0x18] sm:$0xf]
        %v1554 = vld [vmem:[#allocation9 + $0x1c] sm:$0xf]
        %v1555 = vld [vmem:[#allocation9 + $0x20] sm:$0xf]
        %v1556 = vld [vmem:[#allocation9 + $0x24] sm:$0xf]
        %v1557 = vld [vmem:[#allocation9 + $0x28] sm:$0xf]
        %v1558 = vld [vmem:[#allocation9 + $0x2c] sm:$0xf]
        %v1559 = vld [vmem:[#allocation9 + $0x30] sm:$0xf]
        %v1560 = vld [vmem:[#allocation9 + $0x34] sm:$0xf]
        %v1561 = vld [vmem:[#allocation9 + $0x38] sm:$0xf]
        %v1562 = vld [vmem:[#allocation9 + $0x3c] sm:$0xf]
        %v1563 = vpack.c.bf16 %v1540, %v1540
        %v1564 = vld [vmem:[#allocation10] sm:$0xf]
        %v1565 = vld [vmem:[#allocation10 + $0x4] sm:$0xf]
        %v1566 = vld [vmem:[#allocation10 + $0x8] sm:$0xf]
        %v1567 = vld [vmem:[#allocation10 + $0xc] sm:$0xf]
        %v1568 = vld [vmem:[#allocation10 + $0x10] sm:$0xf]
        %v1569 = vld [vmem:[#allocation10 + $0x14] sm:$0xf]
        %v1570 = vld [vmem:[#allocation10 + $0x18] sm:$0xf]
        %v1571 = vld [vmem:[#allocation10 + $0x1c] sm:$0xf]
        %v1572 = vld [vmem:[#allocation10 + $0x20] sm:$0xf]
        %v1573 = vld [vmem:[#allocation10 + $0x24] sm:$0xf]
        %v1574 = vld [vmem:[#allocation10 + $0x28] sm:$0xf]
        %v1575 = vld [vmem:[#allocation10 + $0x2c] sm:$0xf]
        %v1576 = vld [vmem:[#allocation10 + $0x30] sm:$0xf]
        %v1577 = vld [vmem:[#allocation10 + $0x34] sm:$0xf]
        %v1578 = vld [vmem:[#allocation10 + $0x38] sm:$0xf]
        %v1579 = vld [vmem:[#allocation10 + $0x3c] sm:$0xf]
        %v1596 = vunpack.c.l.b16 %v1564
        %v1597 = vunpack.c.l.b16 %v1565
        %v1598 = vunpack.c.l.b16 %v1566
        %v1599 = vunpack.c.l.b16 %v1567
        %v1600 = vunpack.c.l.b16 %v1568
        %v1601 = vunpack.c.l.b16 %v1569
        %v1602 = vunpack.c.l.b16 %v1570
        %v1603 = vunpack.c.l.b16 %v1571
        %v1604 = vunpack.c.l.b16 %v1572
        %v1605 = vunpack.c.l.b16 %v1573
        %v1606 = vunpack.c.l.b16 %v1574
        %v1607 = vunpack.c.l.b16 %v1575
        %v1608 = vunpack.c.l.b16 %v1576
        %v1609 = vunpack.c.l.b16 %v1577
        %v1610 = vunpack.c.l.b16 %v1578
        %v1611 = vunpack.c.l.b16 %v1579
        %v1612 = vpack.c.b16 %v1597, %v1596
        %v1613 = vpack.c.b16 %v1599, %v1598
        %v1614 = vpack.c.b16 %v1601, %v1600
        %v1615 = vpack.c.b16 %v1603, %v1602
        %v1616 = vpack.c.b16 %v1605, %v1604
        %v1617 = vpack.c.b16 %v1607, %v1606
        %v1618 = vpack.c.b16 %v1609, %v1608
        %v1619 = vpack.c.b16 %v1611, %v1610
        %1628 = vmatprep.subr.bf16.mxu0 0
        %1629 = vmatpush1.bf16.msra.mxu0 %v1619
        %1630 = vmatprep.subr.bf16.mxu0 0
        %1631 = vmatpush1.bf16.msra.mxu0 %v1618
        %1632 = vmatprep.subr.bf16.mxu0 0
        %1633 = vmatpush1.bf16.msra.mxu0 %v1617
        %1634 = vmatprep.subr.bf16.mxu0 0
        %1635 = vmatpush1.bf16.msra.mxu0 %v1616
        %1636 = vmatprep.subr.bf16.mxu0 0
        %1637 = vmatpush1.bf16.msra.mxu0 %v1615
        %1638 = vmatprep.subr.bf16.mxu0 0
        %1639 = vmatpush1.bf16.msra.mxu0 %v1614
        %1640 = vmatprep.subr.bf16.mxu0 0
        %1641 = vmatpush1.bf16.msra.mxu0 %v1613
        %1642 = vmatprep.subr.bf16.mxu0 0
        %1643 = vmatpush1.bf16.msra.mxu0 %v1612
        %1644 = vmatprep.subr.bf16.mxu0 0
        %1645 = vmatpush2.bf16.msra.mxu0 0
        %1646 = vmatprep.subr.bf16.mxu0 0
        %1647 = vmatpush2.bf16.msra.mxu0 0
        %1648 = vmatprep.subr.bf16.mxu0 0
        %1649 = vmatpush2.bf16.msra.mxu0 0
        %1650 = vmatprep.subr.bf16.mxu0 0
        %1651 = vmatpush2.bf16.msra.mxu0 0
        %1652 = vmatprep.subr.bf16.mxu0 0
        %1653 = vmatpush2.bf16.msra.mxu0 0
        %1654 = vmatprep.subr.bf16.mxu0 0
        %1655 = vmatpush2.bf16.msra.mxu0 0
        %1656 = vmatprep.subr.bf16.mxu0 0
        %1657 = vmatpush2.bf16.msra.mxu0 0
        %1658 = vmatprep.subr.bf16.mxu0 0
        %1659 = vmatpush2.bf16.msra.mxu0 0
        %1660 = vmatprep.mubr.bf16.mxu0 0
        %1661 = vmatmul.mubr.bf16.gmra.mxu0 %v1563
        %v1662 = vpop.f32.mrf.mxu0
        %v1663 = vadd.f32 0.0, %v1662
        %v1664 = vpop.f32.mrf.mxu0
        %v1665 = vpop.f32.mrf.mxu0
        %v1666 = vpop.f32.mrf.mxu0
        %1667 = vdwg.mxu0
        %v1684 = vunpack.c.l.b16 %v1547
        %v1685 = vunpack.c.l.b16 %v1548
        %v1686 = vunpack.c.l.b16 %v1549
        %v1687 = vunpack.c.l.b16 %v1550
        %v1688 = vunpack.c.l.b16 %v1551
        %v1689 = vunpack.c.l.b16 %v1552
        %v1690 = vunpack.c.l.b16 %v1553
        %v1691 = vunpack.c.l.b16 %v1554
        %v1692 = vunpack.c.l.b16 %v1555
        %v1693 = vunpack.c.l.b16 %v1556
        %v1694 = vunpack.c.l.b16 %v1557
        %v1695 = vunpack.c.l.b16 %v1558
        %v1696 = vunpack.c.l.b16 %v1559
        %v1697 = vunpack.c.l.b16 %v1560
        %v1698 = vunpack.c.l.b16 %v1561
        %v1699 = vunpack.c.l.b16 %v1562
        %v1700 = vpack.c.b16 %v1685, %v1684
        %v1701 = vpack.c.b16 %v1687, %v1686
        %v1702 = vpack.c.b16 %v1689, %v1688
        %v1703 = vpack.c.b16 %v1691, %v1690
        %v1704 = vpack.c.b16 %v1693, %v1692
        %v1705 = vpack.c.b16 %v1695, %v1694
        %v1706 = vpack.c.b16 %v1697, %v1696
        %v1707 = vpack.c.b16 %v1699, %v1698
        %1716 = vmatprep.subr.bf16.mxu0 0
        %1717 = vmatpush1.bf16.msra.mxu0 %v1707
        %1718 = vmatprep.subr.bf16.mxu0 0
        %1719 = vmatpush1.bf16.msra.mxu0 %v1706
        %1720 = vmatprep.subr.bf16.mxu0 0
        %1721 = vmatpush1.bf16.msra.mxu0 %v1705
        %1722 = vmatprep.subr.bf16.mxu0 0
        %1723 = vmatpush1.bf16.msra.mxu0 %v1704
        %1724 = vmatprep.subr.bf16.mxu0 0
        %1725 = vmatpush1.bf16.msra.mxu0 %v1703
        %1726 = vmatprep.subr.bf16.mxu0 0
        %1727 = vmatpush1.bf16.msra.mxu0 %v1702
        %1728 = vmatprep.subr.bf16.mxu0 0
        %1729 = vmatpush1.bf16.msra.mxu0 %v1701
        %1730 = vmatprep.subr.bf16.mxu0 0
        %1731 = vmatpush1.bf16.msra.mxu0 %v1700
        %1732 = vmatprep.subr.bf16.mxu0 0
        %1733 = vmatpush2.bf16.msra.mxu0 0
        %1734 = vmatprep.subr.bf16.mxu0 0
        %1735 = vmatpush2.bf16.msra.mxu0 0
        %1736 = vmatprep.subr.bf16.mxu0 0
        %1737 = vmatpush2.bf16.msra.mxu0 0
        %1738 = vmatprep.subr.bf16.mxu0 0
        %1739 = vmatpush2.bf16.msra.mxu0 0
        %1740 = vmatprep.subr.bf16.mxu0 0
        %1741 = vmatpush2.bf16.msra.mxu0 0
        %1742 = vmatprep.subr.bf16.mxu0 0
        %1743 = vmatpush2.bf16.msra.mxu0 0
        %1744 = vmatprep.subr.bf16.mxu0 0
        %1745 = vmatpush2.bf16.msra.mxu0 0
        %1746 = vmatprep.subr.bf16.mxu0 0
        %1747 = vmatpush2.bf16.msra.mxu0 0
        %1748 = vmatprep.mubr.bf16.mxu0 0
        %1749 = vmatmul.mubr.bf16.gmra.mxu0 %v1546
        %v1750 = vpop.f32.mrf.mxu0
        %v1751 = vadd.f32 %v1663, %v1750
        %v1752 = vpop.f32.mrf.mxu0
        %v1753 = vpop.f32.mrf.mxu0
        %v1754 = vpop.f32.mrf.mxu0
        %1755 = vdwg.mxu0
        %v1756 = vld [vmem:[%s4] sm:$0x1]
        %v1758 = vlaneseq
        %v1759 = vshrl.u32 %v1758, 7
        %v1760 = vsub.s32 0, %v1759
        %v1761 = vrot.slane %v1756, %v1760
        %v1763 = vadd.f32 %v1751, %v1761
        %v1764 = vtanh.pop %v1763
        %s1765 = scalar_lea.vmem [#allocation3], 40
        %1766 = vst [vmem:[%s1765] sm:$0xff] %v1764
        %s1767 = scalar_lea.vmem %s412, 48 [#allocation14]
        %1768 = vst [vmem:[%s1767] sm:$0xff] %v1764
        %s1769 = scalar_lea.vmem %s359, 24 [#allocation4]
        %v1770 = vld [vmem:[%s1769] sm:$0xf]
        %v1771 = vld [vmem:[#allocation9] sm:$0xf]
        %v1772 = vld [vmem:[#allocation9 + $0x4] sm:$0xf]
        %v1773 = vld [vmem:[#allocation9 + $0x8] sm:$0xf]
        %v1774 = vld [vmem:[#allocation9 + $0xc] sm:$0xf]
        %v1775 = vld [vmem:[#allocation9 + $0x10] sm:$0xf]
        %v1776 = vld [vmem:[#allocation9 + $0x14] sm:$0xf]
        %v1777 = vld [vmem:[#allocation9 + $0x18] sm:$0xf]
        %v1778 = vld [vmem:[#allocation9 + $0x1c] sm:$0xf]
        %v1779 = vld [vmem:[#allocation9 + $0x20] sm:$0xf]
        %v1780 = vld [vmem:[#allocation9 + $0x24] sm:$0xf]
        %v1781 = vld [vmem:[#allocation9 + $0x28] sm:$0xf]
        %v1782 = vld [vmem:[#allocation9 + $0x2c] sm:$0xf]
        %v1783 = vld [vmem:[#allocation9 + $0x30] sm:$0xf]
        %v1784 = vld [vmem:[#allocation9 + $0x34] sm:$0xf]
        %v1785 = vld [vmem:[#allocation9 + $0x38] sm:$0xf]
        %v1786 = vld [vmem:[#allocation9 + $0x3c] sm:$0xf]
        %v1787 = vpack.c.bf16 %v1764, %v1764
        %v1788 = vld [vmem:[#allocation10] sm:$0xf]
        %v1789 = vld [vmem:[#allocation10 + $0x4] sm:$0xf]
        %v1790 = vld [vmem:[#allocation10 + $0x8] sm:$0xf]
        %v1791 = vld [vmem:[#allocation10 + $0xc] sm:$0xf]
        %v1792 = vld [vmem:[#allocation10 + $0x10] sm:$0xf]
        %v1793 = vld [vmem:[#allocation10 + $0x14] sm:$0xf]
        %v1794 = vld [vmem:[#allocation10 + $0x18] sm:$0xf]
        %v1795 = vld [vmem:[#allocation10 + $0x1c] sm:$0xf]
        %v1796 = vld [vmem:[#allocation10 + $0x20] sm:$0xf]
        %v1797 = vld [vmem:[#allocation10 + $0x24] sm:$0xf]
        %v1798 = vld [vmem:[#allocation10 + $0x28] sm:$0xf]
        %v1799 = vld [vmem:[#allocation10 + $0x2c] sm:$0xf]
        %v1800 = vld [vmem:[#allocation10 + $0x30] sm:$0xf]
        %v1801 = vld [vmem:[#allocation10 + $0x34] sm:$0xf]
        %v1802 = vld [vmem:[#allocation10 + $0x38] sm:$0xf]
        %v1803 = vld [vmem:[#allocation10 + $0x3c] sm:$0xf]
        %v1820 = vunpack.c.l.b16 %v1788
        %v1821 = vunpack.c.l.b16 %v1789
        %v1822 = vunpack.c.l.b16 %v1790
        %v1823 = vunpack.c.l.b16 %v1791
        %v1824 = vunpack.c.l.b16 %v1792
        %v1825 = vunpack.c.l.b16 %v1793
        %v1826 = vunpack.c.l.b16 %v1794
        %v1827 = vunpack.c.l.b16 %v1795
        %v1828 = vunpack.c.l.b16 %v1796
        %v1829 = vunpack.c.l.b16 %v1797
        %v1830 = vunpack.c.l.b16 %v1798
        %v1831 = vunpack.c.l.b16 %v1799
        %v1832 = vunpack.c.l.b16 %v1800
        %v1833 = vunpack.c.l.b16 %v1801
        %v1834 = vunpack.c.l.b16 %v1802
        %v1835 = vunpack.c.l.b16 %v1803
        %v1836 = vpack.c.b16 %v1821, %v1820
        %v1837 = vpack.c.b16 %v1823, %v1822
        %v1838 = vpack.c.b16 %v1825, %v1824
        %v1839 = vpack.c.b16 %v1827, %v1826
        %v1840 = vpack.c.b16 %v1829, %v1828
        %v1841 = vpack.c.b16 %v1831, %v1830
        %v1842 = vpack.c.b16 %v1833, %v1832
        %v1843 = vpack.c.b16 %v1835, %v1834
        %1852 = vmatprep.subr.bf16.mxu0 0
        %1853 = vmatpush1.bf16.msra.mxu0 %v1843
        %1854 = vmatprep.subr.bf16.mxu0 0
        %1855 = vmatpush1.bf16.msra.mxu0 %v1842
        %1856 = vmatprep.subr.bf16.mxu0 0
        %1857 = vmatpush1.bf16.msra.mxu0 %v1841
        %1858 = vmatprep.subr.bf16.mxu0 0
        %1859 = vmatpush1.bf16.msra.mxu0 %v1840
        %1860 = vmatprep.subr.bf16.mxu0 0
        %1861 = vmatpush1.bf16.msra.mxu0 %v1839
        %1862 = vmatprep.subr.bf16.mxu0 0
        %1863 = vmatpush1.bf16.msra.mxu0 %v1838
        %1864 = vmatprep.subr.bf16.mxu0 0
        %1865 = vmatpush1.bf16.msra.mxu0 %v1837
        %1866 = vmatprep.subr.bf16.mxu0 0
        %1867 = vmatpush1.bf16.msra.mxu0 %v1836
        %1868 = vmatprep.subr.bf16.mxu0 0
        %1869 = vmatpush2.bf16.msra.mxu0 0
        %1870 = vmatprep.subr.bf16.mxu0 0
        %1871 = vmatpush2.bf16.msra.mxu0 0
        %1872 = vmatprep.subr.bf16.mxu0 0
        %1873 = vmatpush2.bf16.msra.mxu0 0
        %1874 = vmatprep.subr.bf16.mxu0 0
        %1875 = vmatpush2.bf16.msra.mxu0 0
        %1876 = vmatprep.subr.bf16.mxu0 0
        %1877 = vmatpush2.bf16.msra.mxu0 0
        %1878 = vmatprep.subr.bf16.mxu0 0
        %1879 = vmatpush2.bf16.msra.mxu0 0
        %1880 = vmatprep.subr.bf16.mxu0 0
        %1881 = vmatpush2.bf16.msra.mxu0 0
        %1882 = vmatprep.subr.bf16.mxu0 0
        %1883 = vmatpush2.bf16.msra.mxu0 0
        %1884 = vmatprep.mubr.bf16.mxu0 0
        %1885 = vmatmul.mubr.bf16.gmra.mxu0 %v1787
        %v1886 = vpop.f32.mrf.mxu0
        %v1887 = vadd.f32 0.0, %v1886
        %v1888 = vpop.f32.mrf.mxu0
        %v1889 = vpop.f32.mrf.mxu0
        %v1890 = vpop.f32.mrf.mxu0
        %1891 = vdwg.mxu0
        %v1908 = vunpack.c.l.b16 %v1771
        %v1909 = vunpack.c.l.b16 %v1772
        %v1910 = vunpack.c.l.b16 %v1773
        %v1911 = vunpack.c.l.b16 %v1774
        %v1912 = vunpack.c.l.b16 %v1775
        %v1913 = vunpack.c.l.b16 %v1776
        %v1914 = vunpack.c.l.b16 %v1777
        %v1915 = vunpack.c.l.b16 %v1778
        %v1916 = vunpack.c.l.b16 %v1779
        %v1917 = vunpack.c.l.b16 %v1780
        %v1918 = vunpack.c.l.b16 %v1781
        %v1919 = vunpack.c.l.b16 %v1782
        %v1920 = vunpack.c.l.b16 %v1783
        %v1921 = vunpack.c.l.b16 %v1784
        %v1922 = vunpack.c.l.b16 %v1785
        %v1923 = vunpack.c.l.b16 %v1786
        %v1924 = vpack.c.b16 %v1909, %v1908
        %v1925 = vpack.c.b16 %v1911, %v1910
        %v1926 = vpack.c.b16 %v1913, %v1912
        %v1927 = vpack.c.b16 %v1915, %v1914
        %v1928 = vpack.c.b16 %v1917, %v1916
        %v1929 = vpack.c.b16 %v1919, %v1918
        %v1930 = vpack.c.b16 %v1921, %v1920
        %v1931 = vpack.c.b16 %v1923, %v1922
        %1940 = vmatprep.subr.bf16.mxu0 0
        %1941 = vmatpush1.bf16.msra.mxu0 %v1931
        %1942 = vmatprep.subr.bf16.mxu0 0
        %1943 = vmatpush1.bf16.msra.mxu0 %v1930
        %1944 = vmatprep.subr.bf16.mxu0 0
        %1945 = vmatpush1.bf16.msra.mxu0 %v1929
        %1946 = vmatprep.subr.bf16.mxu0 0
        %1947 = vmatpush1.bf16.msra.mxu0 %v1928
        %1948 = vmatprep.subr.bf16.mxu0 0
        %1949 = vmatpush1.bf16.msra.mxu0 %v1927
        %1950 = vmatprep.subr.bf16.mxu0 0
        %1951 = vmatpush1.bf16.msra.mxu0 %v1926
        %1952 = vmatprep.subr.bf16.mxu0 0
        %1953 = vmatpush1.bf16.msra.mxu0 %v1925
        %1954 = vmatprep.subr.bf16.mxu0 0
        %1955 = vmatpush1.bf16.msra.mxu0 %v1924
        %1956 = vmatprep.subr.bf16.mxu0 0
        %1957 = vmatpush2.bf16.msra.mxu0 0
        %1958 = vmatprep.subr.bf16.mxu0 0
        %1959 = vmatpush2.bf16.msra.mxu0 0
        %1960 = vmatprep.subr.bf16.mxu0 0
        %1961 = vmatpush2.bf16.msra.mxu0 0
        %1962 = vmatprep.subr.bf16.mxu0 0
        %1963 = vmatpush2.bf16.msra.mxu0 0
        %1964 = vmatprep.subr.bf16.mxu0 0
        %1965 = vmatpush2.bf16.msra.mxu0 0
        %1966 = vmatprep.subr.bf16.mxu0 0
        %1967 = vmatpush2.bf16.msra.mxu0 0
        %1968 = vmatprep.subr.bf16.mxu0 0
        %1969 = vmatpush2.bf16.msra.mxu0 0
        %1970 = vmatprep.subr.bf16.mxu0 0
        %1971 = vmatpush2.bf16.msra.mxu0 0
        %1972 = vmatprep.mubr.bf16.mxu0 0
        %1973 = vmatmul.mubr.bf16.gmra.mxu0 %v1770
        %v1974 = vpop.f32.mrf.mxu0
        %v1975 = vadd.f32 %v1887, %v1974
        %v1976 = vpop.f32.mrf.mxu0
        %v1977 = vpop.f32.mrf.mxu0
        %v1978 = vpop.f32.mrf.mxu0
        %1979 = vdwg.mxu0
        %v1980 = vld [vmem:[%s4] sm:$0x1]
        %v1982 = vlaneseq
        %v1983 = vshrl.u32 %v1982, 7
        %v1984 = vsub.s32 0, %v1983
        %v1985 = vrot.slane %v1980, %v1984
        %v1987 = vadd.f32 %v1975, %v1985
        %v1988 = vtanh.pop %v1987
        %s1989 = scalar_lea.vmem [#allocation3], 48
        %1990 = vst [vmem:[%s1989] sm:$0xff] %v1988
        %s1991 = scalar_lea.vmem %s412, 56 [#allocation14]
        %1992 = vst [vmem:[%s1991] sm:$0xff] %v1988
        %s1993 = scalar_lea.vmem %s359, 28 [#allocation4]
        %v1994 = vld [vmem:[%s1993] sm:$0xf]
        %v1995 = vld [vmem:[#allocation9] sm:$0xf]
        %v1996 = vld [vmem:[#allocation9 + $0x4] sm:$0xf]
        %v1997 = vld [vmem:[#allocation9 + $0x8] sm:$0xf]
        %v1998 = vld [vmem:[#allocation9 + $0xc] sm:$0xf]
        %v1999 = vld [vmem:[#allocation9 + $0x10] sm:$0xf]
        %v2000 = vld [vmem:[#allocation9 + $0x14] sm:$0xf]
        %v2001 = vld [vmem:[#allocation9 + $0x18] sm:$0xf]
        %v2002 = vld [vmem:[#allocation9 + $0x1c] sm:$0xf]
        %v2003 = vld [vmem:[#allocation9 + $0x20] sm:$0xf]
        %v2004 = vld [vmem:[#allocation9 + $0x24] sm:$0xf]
        %v2005 = vld [vmem:[#allocation9 + $0x28] sm:$0xf]
        %v2006 = vld [vmem:[#allocation9 + $0x2c] sm:$0xf]
        %v2007 = vld [vmem:[#allocation9 + $0x30] sm:$0xf]
        %v2008 = vld [vmem:[#allocation9 + $0x34] sm:$0xf]
        %v2009 = vld [vmem:[#allocation9 + $0x38] sm:$0xf]
        %v2010 = vld [vmem:[#allocation9 + $0x3c] sm:$0xf]
        %v2011 = vpack.c.bf16 %v1988, %v1988
        %v2012 = vld [vmem:[#allocation10] sm:$0xf]
        %v2013 = vld [vmem:[#allocation10 + $0x4] sm:$0xf]
        %v2014 = vld [vmem:[#allocation10 + $0x8] sm:$0xf]
        %v2015 = vld [vmem:[#allocation10 + $0xc] sm:$0xf]
        %v2016 = vld [vmem:[#allocation10 + $0x10] sm:$0xf]
        %v2017 = vld [vmem:[#allocation10 + $0x14] sm:$0xf]
        %v2018 = vld [vmem:[#allocation10 + $0x18] sm:$0xf]
        %v2019 = vld [vmem:[#allocation10 + $0x1c] sm:$0xf]
        %v2020 = vld [vmem:[#allocation10 + $0x20] sm:$0xf]
        %v2021 = vld [vmem:[#allocation10 + $0x24] sm:$0xf]
        %v2022 = vld [vmem:[#allocation10 + $0x28] sm:$0xf]
        %v2023 = vld [vmem:[#allocation10 + $0x2c] sm:$0xf]
        %v2024 = vld [vmem:[#allocation10 + $0x30] sm:$0xf]
        %v2025 = vld [vmem:[#allocation10 + $0x34] sm:$0xf]
        %v2026 = vld [vmem:[#allocation10 + $0x38] sm:$0xf]
        %v2027 = vld [vmem:[#allocation10 + $0x3c] sm:$0xf]
        %v2044 = vunpack.c.l.b16 %v2012
        %v2045 = vunpack.c.l.b16 %v2013
        %v2046 = vunpack.c.l.b16 %v2014
        %v2047 = vunpack.c.l.b16 %v2015
        %v2048 = vunpack.c.l.b16 %v2016
        %v2049 = vunpack.c.l.b16 %v2017
        %v2050 = vunpack.c.l.b16 %v2018
        %v2051 = vunpack.c.l.b16 %v2019
        %v2052 = vunpack.c.l.b16 %v2020
        %v2053 = vunpack.c.l.b16 %v2021
        %v2054 = vunpack.c.l.b16 %v2022
        %v2055 = vunpack.c.l.b16 %v2023
        %v2056 = vunpack.c.l.b16 %v2024
        %v2057 = vunpack.c.l.b16 %v2025
        %v2058 = vunpack.c.l.b16 %v2026
        %v2059 = vunpack.c.l.b16 %v2027
        %v2060 = vpack.c.b16 %v2045, %v2044
        %v2061 = vpack.c.b16 %v2047, %v2046
        %v2062 = vpack.c.b16 %v2049, %v2048
        %v2063 = vpack.c.b16 %v2051, %v2050
        %v2064 = vpack.c.b16 %v2053, %v2052
        %v2065 = vpack.c.b16 %v2055, %v2054
        %v2066 = vpack.c.b16 %v2057, %v2056
        %v2067 = vpack.c.b16 %v2059, %v2058
        %2076 = vmatprep.subr.bf16.mxu0 0
        %2077 = vmatpush1.bf16.msra.mxu0 %v2067
        %2078 = vmatprep.subr.bf16.mxu0 0
        %2079 = vmatpush1.bf16.msra.mxu0 %v2066
        %2080 = vmatprep.subr.bf16.mxu0 0
        %2081 = vmatpush1.bf16.msra.mxu0 %v2065
        %2082 = vmatprep.subr.bf16.mxu0 0
        %2083 = vmatpush1.bf16.msra.mxu0 %v2064
        %2084 = vmatprep.subr.bf16.mxu0 0
        %2085 = vmatpush1.bf16.msra.mxu0 %v2063
        %2086 = vmatprep.subr.bf16.mxu0 0
        %2087 = vmatpush1.bf16.msra.mxu0 %v2062
        %2088 = vmatprep.subr.bf16.mxu0 0
        %2089 = vmatpush1.bf16.msra.mxu0 %v2061
        %2090 = vmatprep.subr.bf16.mxu0 0
        %2091 = vmatpush1.bf16.msra.mxu0 %v2060
        %2092 = vmatprep.subr.bf16.mxu0 0
        %2093 = vmatpush2.bf16.msra.mxu0 0
        %2094 = vmatprep.subr.bf16.mxu0 0
        %2095 = vmatpush2.bf16.msra.mxu0 0
        %2096 = vmatprep.subr.bf16.mxu0 0
        %2097 = vmatpush2.bf16.msra.mxu0 0
        %2098 = vmatprep.subr.bf16.mxu0 0
        %2099 = vmatpush2.bf16.msra.mxu0 0
        %2100 = vmatprep.subr.bf16.mxu0 0
        %2101 = vmatpush2.bf16.msra.mxu0 0
        %2102 = vmatprep.subr.bf16.mxu0 0
        %2103 = vmatpush2.bf16.msra.mxu0 0
        %2104 = vmatprep.subr.bf16.mxu0 0
        %2105 = vmatpush2.bf16.msra.mxu0 0
        %2106 = vmatprep.subr.bf16.mxu0 0
        %2107 = vmatpush2.bf16.msra.mxu0 0
        %2108 = vmatprep.mubr.bf16.mxu0 0
        %2109 = vmatmul.mubr.bf16.gmra.mxu0 %v2011
        %v2110 = vpop.f32.mrf.mxu0
        %v2111 = vadd.f32 0.0, %v2110
        %v2112 = vpop.f32.mrf.mxu0
        %v2113 = vpop.f32.mrf.mxu0
        %v2114 = vpop.f32.mrf.mxu0
        %2115 = vdwg.mxu0
        %v2132 = vunpack.c.l.b16 %v1995
        %v2133 = vunpack.c.l.b16 %v1996
        %v2134 = vunpack.c.l.b16 %v1997
        %v2135 = vunpack.c.l.b16 %v1998
        %v2136 = vunpack.c.l.b16 %v1999
        %v2137 = vunpack.c.l.b16 %v2000
        %v2138 = vunpack.c.l.b16 %v2001
        %v2139 = vunpack.c.l.b16 %v2002
        %v2140 = vunpack.c.l.b16 %v2003
        %v2141 = vunpack.c.l.b16 %v2004
        %v2142 = vunpack.c.l.b16 %v2005
        %v2143 = vunpack.c.l.b16 %v2006
        %v2144 = vunpack.c.l.b16 %v2007
        %v2145 = vunpack.c.l.b16 %v2008
        %v2146 = vunpack.c.l.b16 %v2009
        %v2147 = vunpack.c.l.b16 %v2010
        %v2148 = vpack.c.b16 %v2133, %v2132
        %v2149 = vpack.c.b16 %v2135, %v2134
        %v2150 = vpack.c.b16 %v2137, %v2136
        %v2151 = vpack.c.b16 %v2139, %v2138
        %v2152 = vpack.c.b16 %v2141, %v2140
        %v2153 = vpack.c.b16 %v2143, %v2142
        %v2154 = vpack.c.b16 %v2145, %v2144
        %v2155 = vpack.c.b16 %v2147, %v2146
        %2164 = vmatprep.subr.bf16.mxu0 0
        %2165 = vmatpush1.bf16.msra.mxu0 %v2155
        %2166 = vmatprep.subr.bf16.mxu0 0
        %2167 = vmatpush1.bf16.msra.mxu0 %v2154
        %2168 = vmatprep.subr.bf16.mxu0 0
        %2169 = vmatpush1.bf16.msra.mxu0 %v2153
        %2170 = vmatprep.subr.bf16.mxu0 0
        %2171 = vmatpush1.bf16.msra.mxu0 %v2152
        %2172 = vmatprep.subr.bf16.mxu0 0
        %2173 = vmatpush1.bf16.msra.mxu0 %v2151
        %2174 = vmatprep.subr.bf16.mxu0 0
        %2175 = vmatpush1.bf16.msra.mxu0 %v2150
        %2176 = vmatprep.subr.bf16.mxu0 0
        %2177 = vmatpush1.bf16.msra.mxu0 %v2149
        %2178 = vmatprep.subr.bf16.mxu0 0
        %2179 = vmatpush1.bf16.msra.mxu0 %v2148
        %2180 = vmatprep.subr.bf16.mxu0 0
        %2181 = vmatpush2.bf16.msra.mxu0 0
        %2182 = vmatprep.subr.bf16.mxu0 0
        %2183 = vmatpush2.bf16.msra.mxu0 0
        %2184 = vmatprep.subr.bf16.mxu0 0
        %2185 = vmatpush2.bf16.msra.mxu0 0
        %2186 = vmatprep.subr.bf16.mxu0 0
        %2187 = vmatpush2.bf16.msra.mxu0 0
        %2188 = vmatprep.subr.bf16.mxu0 0
        %2189 = vmatpush2.bf16.msra.mxu0 0
        %2190 = vmatprep.subr.bf16.mxu0 0
        %2191 = vmatpush2.bf16.msra.mxu0 0
        %2192 = vmatprep.subr.bf16.mxu0 0
        %2193 = vmatpush2.bf16.msra.mxu0 0
        %2194 = vmatprep.subr.bf16.mxu0 0
        %2195 = vmatpush2.bf16.msra.mxu0 0
        %2196 = vmatprep.mubr.bf16.mxu0 0
        %2197 = vmatmul.mubr.bf16.gmra.mxu0 %v1994
        %v2198 = vpop.f32.mrf.mxu0
        %v2199 = vadd.f32 %v2111, %v2198
        %v2200 = vpop.f32.mrf.mxu0
        %v2201 = vpop.f32.mrf.mxu0
        %v2202 = vpop.f32.mrf.mxu0
        %2203 = vdwg.mxu0
        %v2204 = vld [vmem:[%s4] sm:$0x1]
        %v2206 = vlaneseq
        %v2207 = vshrl.u32 %v2206, 7
        %v2208 = vsub.s32 0, %v2207
        %v2209 = vrot.slane %v2204, %v2208
        %v2211 = vadd.f32 %v2199, %v2209
        %v2212 = vtanh.pop %v2211
        %s2213 = scalar_lea.vmem [#allocation3], 56
        %2214 = vst [vmem:[%s2213] sm:$0xff] %v2212
        %2215 = vst [vmem:[#allocation2] sm:$0xff] %v2212
        %p2216 = scmp.eq.s32.totalorder %s32, 1
        // Predicated region
        $region73: #{tpu_custom_call.1} parent=47 // pred_check
          %p2217 = pneg %p2216
        $region74: #{tpu_custom_call.1} parent=47 // pred_check_branch
          %2219 = sbr.rel (%p2217) target = $region76
        $region75: #{tpu_custom_call.1} parent=47 // pred_region
          %2220 = vst [vmem:[#allocation16] sm:$0xff] %v2212
        $region76: #{tpu_custom_call.1} parent=47 // pred_fallthru
          _
        %v2221 = vld [vmem:[#allocation3] sm:$0xff]
        %v2222 = vld [vmem:[#allocation3 + $0x8] sm:$0xff]
        %v2223 = vld [vmem:[#allocation3 + $0x10] sm:$0xff]
        %v2224 = vld [vmem:[#allocation3 + $0x18] sm:$0xff]
        %v2225 = vld [vmem:[#allocation3 + $0x20] sm:$0xff]
        %v2226 = vld [vmem:[#allocation3 + $0x28] sm:$0xff]
        %v2227 = vld [vmem:[#allocation3 + $0x30] sm:$0xff]
        %v2228 = vld [vmem:[#allocation3 + $0x38] sm:$0xff]
        %v2229 = vpack.c.bf16 %v2222, %v2221
        %v2230 = vpack.c.bf16 %v2224, %v2223
        %v2231 = vpack.c.bf16 %v2226, %v2225
        %v2232 = vpack.c.bf16 %v2228, %v2227
        %v2233 = vld [vmem:[#allocation12] sm:$0xf]
        %v2234 = vld [vmem:[#allocation12 + $0x4] sm:$0xf]
        %v2235 = vld [vmem:[#allocation12 + $0x8] sm:$0xf]
        %v2236 = vld [vmem:[#allocation12 + $0xc] sm:$0xf]
        %v2237 = vld [vmem:[#allocation12 + $0x10] sm:$0xf]
        %v2238 = vld [vmem:[#allocation12 + $0x14] sm:$0xf]
        %v2239 = vld [vmem:[#allocation12 + $0x18] sm:$0xf]
        %v2240 = vld [vmem:[#allocation12 + $0x1c] sm:$0xf]
        %v2241 = vld [vmem:[#allocation12 + $0x20] sm:$0xf]
        %v2242 = vld [vmem:[#allocation12 + $0x24] sm:$0xf]
        %v2243 = vld [vmem:[#allocation12 + $0x28] sm:$0xf]
        %v2244 = vld [vmem:[#allocation12 + $0x2c] sm:$0xf]
        %v2245 = vld [vmem:[#allocation12 + $0x30] sm:$0xf]
        %v2246 = vld [vmem:[#allocation12 + $0x34] sm:$0xf]
        %v2247 = vld [vmem:[#allocation12 + $0x38] sm:$0xf]
        %v2248 = vld [vmem:[#allocation12 + $0x3c] sm:$0xf]
        %v2249 = vld [vmem:[%s6] sm:$0x1]
        %v2251 = vlaneseq
        %v2252 = vshrl.u32 %v2251, 7
        %v2253 = vsub.s32 0, %v2252
        %v2254 = vrot.slane %v2249, %v2253
        %v2272 = vunpack.c.l.b16 %v2233
        %v2273 = vunpack.c.l.b16 %v2234
        %v2274 = vunpack.c.l.b16 %v2235
        %v2275 = vunpack.c.l.b16 %v2236
        %v2276 = vunpack.c.l.b16 %v2237
        %v2277 = vunpack.c.l.b16 %v2238
        %v2278 = vunpack.c.l.b16 %v2239
        %v2279 = vunpack.c.l.b16 %v2240
        %v2280 = vunpack.c.l.b16 %v2241
        %v2281 = vunpack.c.l.b16 %v2242
        %v2282 = vunpack.c.l.b16 %v2243
        %v2283 = vunpack.c.l.b16 %v2244
        %v2284 = vunpack.c.l.b16 %v2245
        %v2285 = vunpack.c.l.b16 %v2246
        %v2286 = vunpack.c.l.b16 %v2247
        %v2287 = vunpack.c.l.b16 %v2248
        %v2288 = vpack.c.b16 %v2273, %v2272
        %v2289 = vpack.c.b16 %v2275, %v2274
        %v2290 = vpack.c.b16 %v2277, %v2276
        %v2291 = vpack.c.b16 %v2279, %v2278
        %v2292 = vpack.c.b16 %v2281, %v2280
        %v2293 = vpack.c.b16 %v2283, %v2282
        %v2294 = vpack.c.b16 %v2285, %v2284
        %v2295 = vpack.c.b16 %v2287, %v2286
        %2304 = vmatprep.subr.bf16.mxu0 0
        %2305 = vmatpush1.bf16.msra.mxu0 %v2295
        %2306 = vmatprep.subr.bf16.mxu0 0
        %2307 = vmatpush1.bf16.msra.mxu0 %v2294
        %2308 = vmatprep.subr.bf16.mxu0 0
        %2309 = vmatpush1.bf16.msra.mxu0 %v2293
        %2310 = vmatprep.subr.bf16.mxu0 0
        %2311 = vmatpush1.bf16.msra.mxu0 %v2292
        %2312 = vmatprep.subr.bf16.mxu0 0
        %2313 = vmatpush1.bf16.msra.mxu0 %v2291
        %2314 = vmatprep.subr.bf16.mxu0 0
        %2315 = vmatpush1.bf16.msra.mxu0 %v2290
        %2316 = vmatprep.subr.bf16.mxu0 0
        %2317 = vmatpush1.bf16.msra.mxu0 %v2289
        %2318 = vmatprep.subr.bf16.mxu0 0
        %2319 = vmatpush1.bf16.msra.mxu0 %v2288
        %2320 = vmatprep.subr.bf16.mxu0 0
        %2321 = vmatpush2.bf16.msra.mxu0 0
        %2322 = vmatprep.subr.bf16.mxu0 0
        %2323 = vmatpush2.bf16.msra.mxu0 0
        %2324 = vmatprep.subr.bf16.mxu0 0
        %2325 = vmatpush2.bf16.msra.mxu0 0
        %2326 = vmatprep.subr.bf16.mxu0 0
        %2327 = vmatpush2.bf16.msra.mxu0 0
        %2328 = vmatprep.subr.bf16.mxu0 0
        %2329 = vmatpush2.bf16.msra.mxu0 0
        %2330 = vmatprep.subr.bf16.mxu0 0
        %2331 = vmatpush2.bf16.msra.mxu0 0
        %2332 = vmatprep.subr.bf16.mxu0 0
        %2333 = vmatpush2.bf16.msra.mxu0 0
        %2334 = vmatprep.subr.bf16.mxu0 0
        %2335 = vmatpush2.bf16.msra.mxu0 0
        %2336 = vmatprep.mubr.bf16.mxu0 0
        %2337 = vmatmul.mubr.bf16.gmra.mxu0 %v2229
        %v2338 = vpop.f32.mrf.mxu0
        %v2339 = vadd.f32 %v2254, %v2338
        %v2340 = vpop.f32.mrf.mxu0
        %v2341 = vpop.f32.mrf.mxu0
        %v2342 = vadd.f32 %v2254, %v2341
        %v2343 = vpop.f32.mrf.mxu0
        %2344 = vmatprep.mubr.bf16.mxu0 0
        %2345 = vmatmul.mubr.bf16.gmra.mxu0 %v2230
        %v2346 = vpop.f32.mrf.mxu0
        %v2347 = vadd.f32 %v2254, %v2346
        %v2348 = vpop.f32.mrf.mxu0
        %v2349 = vpop.f32.mrf.mxu0
        %v2350 = vadd.f32 %v2254, %v2349
        %v2351 = vpop.f32.mrf.mxu0
        %2352 = vmatprep.mubr.bf16.mxu0 0
        %2353 = vmatmul.mubr.bf16.gmra.mxu0 %v2231
        %v2354 = vpop.f32.mrf.mxu0
        %v2355 = vadd.f32 %v2254, %v2354
        %v2356 = vpop.f32.mrf.mxu0
        %v2357 = vpop.f32.mrf.mxu0
        %v2358 = vadd.f32 %v2254, %v2357
        %v2359 = vpop.f32.mrf.mxu0
        %2360 = vmatprep.mubr.bf16.mxu0 0
        %2361 = vmatmul.mubr.bf16.gmra.mxu0 %v2232
        %v2362 = vpop.f32.mrf.mxu0
        %v2363 = vadd.f32 %v2254, %v2362
        %v2364 = vpop.f32.mrf.mxu0
        %v2365 = vpop.f32.mrf.mxu0
        %v2366 = vadd.f32 %v2254, %v2365
        %v2367 = vpop.f32.mrf.mxu0
        %2368 = vdwg.mxu0
        %2369 = vst [vmem:[%s405] sm:$0xff] %v2339
        %2370 = vst [vmem:[%s405 + $0x8] sm:$0xff] %v2342
        %2371 = vst [vmem:[%s405 + $0x10] sm:$0xff] %v2347
        %2372 = vst [vmem:[%s405 + $0x18] sm:$0xff] %v2350
        %2373 = vst [vmem:[%s405 + $0x20] sm:$0xff] %v2355
        %2374 = vst [vmem:[%s405 + $0x28] sm:$0xff] %v2358
        %2375 = vst [vmem:[%s405 + $0x30] sm:$0xff] %v2363
        %2376 = vst [vmem:[%s405 + $0x38] sm:$0xff] %v2366
        %s2377 = sand.u32 %s192, 1
        %s2378 = scalar_lea.sflag [#allocation6], %s2377
        %s2379 = sand.u32 %s192, 1
        %s2380 = smul.addr %s2379, 64
        %s2381 = scalar_lea.vmem [#allocation13], %s2380
        %s2382 = sand.u32 %s32, 1
        %s2383 = scalar_lea.sflag [#allocation15], %s2382
        %s2384 = sand.u32 %s218, 1
        %s2385 = smul.addr %s2384, 64
        %s2386 = scalar_lea.vmem [#allocation14], %s2385
        // Predicated region
        $region77: #{tpu_custom_call.1} parent=47 // pred_check
          %p2387 = pneg %p202
        $region78: #{tpu_custom_call.1} parent=47 // pred_check_branch
          %2389 = sbr.rel (%p2387) target = $region80
        $region79: #{tpu_custom_call.1} parent=47 // pred_region
          %s2390 = smul.u32 8, %s32
          %s2392 = ssub.s32 1024, 1024
          %2393 = vsyncadd %s2378, %s2392
          %s2394 = smul.addr %s2390, 128
          %s2395 = scalar_lea.hbm %s7, %s2394
          %s2396 = sshll.u32 %s2381, 4
          %s2397 = int_to_ptr.vmem [resolvable:$true] %s2396
          %2402 = dma.vmem_to_hbm [thread:$0]  %s2397, 1024, %s2395, %s2378, 128, 128, 8
        $region80: #{tpu_custom_call.1} parent=47 // pred_fallthru
          _
        // Predicated region
        $region81: #{tpu_custom_call.1} parent=47 // pred_check
          %p2403 = pneg %p228
        $region82: #{tpu_custom_call.1} parent=47 // pred_check_branch
          %2405 = sbr.rel (%p2403) target = $region84
        $region83: #{tpu_custom_call.1} parent=47 // pred_region
          %s2406 = smul.u32 8, %s32
          %s2408 = ssub.s32 1024, 1024
          %2409 = vsyncadd %s2383, %s2408
          %s2410 = smul.addr %s2406, 128
          %s2411 = scalar_lea.hbm %s8, %s2410
          %s2412 = sshll.u32 %s2386, 4
          %s2413 = int_to_ptr.vmem [resolvable:$true] %s2412
          %2418 = dma.vmem_to_hbm [thread:$0]  %s2413, 1024, %s2411, %s2383, 128, 128, 8
        $region84: #{tpu_custom_call.1} parent=47 // pred_fallthru
          _
        // Predicated region
        $region85: #{tpu_custom_call.1} parent=47 // pred_check
          %p2419 = pneg %p249
        $region86: #{tpu_custom_call.1} parent=47 // pred_check_branch
          %2421 = sbr.rel (%p2419) target = $region88
        $region87: #{tpu_custom_call.1} parent=47 // pred_region
          %s2423 = ssub.s32 128, 128
          %2424 = vsyncadd [#allocation15], %s2423
          %s2426 = sshll.u32 [#allocation16], 4
          %s2427 = int_to_ptr.vmem [resolvable:$true] %s2426
          %2429 = dma.vmem_to_hbm [thread:$0]  %s2427, 128, %s9, [#allocation15]
        $region88: #{tpu_custom_call.1} parent=47 // pred_fallthru
          _
        // Predicated region
        $region89: #{tpu_custom_call.1} parent=47 // pred_check
          %p2430 = pneg %p249
        $region90: #{tpu_custom_call.1} parent=47 // pred_check_branch
          %2432 = sbr.rel (%p2430) target = $region92
        $region91: #{tpu_custom_call.1} parent=47 // pred_region
          %2433 = dma.done [#allocation15], 128
        $region92: #{tpu_custom_call.1} parent=47 // pred_fallthru
          _
      $region48: #{tpu_custom_call.1} parent=5 // pred_fallthru
        _
      %p2434 = scmp.le.s32.totalorder 2, %s27
      // Predicated region
      $region93: #{tpu_custom_call.1} parent=5 // pred_check
        %p2435 = pneg %p2434
      $region94: #{tpu_custom_call.1} parent=5 // pred_check_branch
        %2437 = sbr.rel (%p2435) target = $region96
      $region95: #{tpu_custom_call.1} parent=5 // pred_region
        %s2438 = ssub.s32 %s27, 2
        // Predicated region
        $region97: #{tpu_custom_call.1} parent=95 // pred_check
          %p2439 = pneg %p208
        $region98: #{tpu_custom_call.1} parent=95 // pred_check_branch
          %2441 = sbr.rel (%p2439) target = $region100
        $region99: #{tpu_custom_call.1} parent=95 // pred_region
          %s2442 = sand.u32 %s193, 1
          %s2443 = scalar_lea.sflag [#allocation6], %s2442
          %s2444 = sand.u32 %s193, 1
          %s2445 = smul.addr %s2444, 64
          %s2446 = scalar_lea.vmem [#allocation13], %s2445
          %2447 = dma.done %s2443, 1024
        $region100: #{tpu_custom_call.1} parent=95 // pred_fallthru
          _
        // Predicated region
        $region101: #{tpu_custom_call.1} parent=95 // pred_check
          %p2448 = pneg %p234
        $region102: #{tpu_custom_call.1} parent=95 // pred_check_branch
          %2450 = sbr.rel (%p2448) target = $region104
        $region103: #{tpu_custom_call.1} parent=95 // pred_region
          %s2451 = sand.u32 %s33, 1
          %s2452 = scalar_lea.sflag [#allocation15], %s2451
          %s2453 = sand.u32 %s219, 1
          %s2454 = smul.addr %s2453, 64
          %s2455 = scalar_lea.vmem [#allocation14], %s2454
          %2456 = dma.done %s2452, 1024
        $region104: #{tpu_custom_call.1} parent=95 // pred_fallthru
          _
      $region96: #{tpu_custom_call.1} parent=5 // pred_fallthru
        _
    $region6: #{tpu_custom_call.1} parent=1 // loop_footer
      %s31 = sadd.s32 1, %s27
    $region7: #{tpu_custom_call.1} parent=1 // loop_footer_branch
      %26 = sbr.rel target = $region3
    $region8: #{tpu_custom_call.1} parent=1 // loop_exit
      _
    %2457 = vsyncpa [#allocation5], 1
    %s2458 = scalar_lea.sflag [#allocation5], 1
    %2459 = vsyncpa %s2458, 1
    %2460 = vsyncpa [#allocation8], 1
    %2461 = vsyncpa [#allocation11], 1
    %2462 = vsyncpa [#allocation6], 1
    %s2463 = scalar_lea.sflag [#allocation6], 1
    %2464 = vsyncpa %s2463, 1
    %2465 = vsyncpa [#allocation15], 1
    %s2466 = scalar_lea.sflag [#allocation15], 1
    %2467 = vsyncpa %s2466, 1

</llo_original>
